<compile_context>
chip_gen: v7x
topology: tpu7x:2x2x1
jax: 0.10.0
libtpu: 0.0.40
codegen_flags: <defaults>
</compile_context>

<pallas_src>
import jax
import jax.numpy as jnp
from jax.experimental import pallas as pl
from jax.experimental.pallas import tpu as pltpu


def fc_model_kernel(x_ref,
                    w1_ref, b1_ref,
                    w2_ref, b2_ref,
                    w3_ref, b3_ref,
                    wo_ref, bo_ref,
                    o_ref):
    # Hidden layer 1: 896 (784 zero-padded) -> 512, ReLU.
    # x_ref / w*_ref are bf16; accumulate in f32 on the MXU.
    h = jnp.dot(x_ref[...], w1_ref[...], preferred_element_type=jnp.float32)
    h = jnp.maximum(h + b1_ref[...], 0.0)
    # TODO(synk): nn.Dropout(p=0.2) is identity in eval mode; training-mode RNG mask not implemented.

    # Hidden layer 2: 512 -> 256, ReLU
    h = jnp.dot(h.astype(jnp.bfloat16), w2_ref[...],
                preferred_element_type=jnp.float32)
    h = jnp.maximum(h + b2_ref[...], 0.0)

    # Hidden layer 3: 256 -> 128, ReLU
    h = jnp.dot(h.astype(jnp.bfloat16), w3_ref[...],
                preferred_element_type=jnp.float32)
    h = jnp.maximum(h + b3_ref[...], 0.0)

    # Output layer: 128 -> 128 (real classes in lanes [0, 10); padded weight
    # columns are zero and padded bias lanes are -1e30, so padded logits
    # contribute nothing to the softmax).
    logits = jnp.dot(h.astype(jnp.bfloat16), wo_ref[...],
                     preferred_element_type=jnp.float32)
    logits = logits + bo_ref[...]

    # log_softmax over the lane axis (numerically stable, f32).
    m = jnp.max(logits, axis=1, keepdims=True)
    shifted = logits - m
    lse = jnp.log(jnp.sum(jnp.exp(shifted), axis=1, keepdims=True))
    o_ref[...] = shifted - lse


def fc_model_forward(x, params, *, tile_b=256):
    """x: [B, 784] float32 -> log-probabilities [B, 10] float32."""
    if x.shape[1] != 784:
        raise ValueError('Expected each sample to have shape [1, 784]')
    (w1, b1), (w2, b2), (w3, b3), (wo, bo) = params

    B = x.shape[0]
    n_classes = wo.shape[1]          # 10
    H1, H2, H3 = w1.shape[1], w2.shape[1], w3.shape[1]   # 512, 256, 128
    K1 = 896                         # 784 padded to a multiple of 128
    NO = 128                         # output lanes padded to 128

    # Adapt the batch tile to small batches: round B up to a multiple of 8
    # (sublane granularity) and never exceed the requested tile_b.
    b_pad8 = ((B + 7) // 8) * 8
    tb = min(tile_b, b_pad8)
    n_tiles = pl.cdiv(B, tb)
    Bp = n_tiles * tb

    # ---- one-time padding / bf16 casting (plain XLA ops outside the kernel) ----
    x_p = jnp.zeros((Bp, K1), jnp.bfloat16).at[:B, :784].set(
        x.astype(jnp.bfloat16))
    w1_p = jnp.zeros((K1, H1), jnp.bfloat16).at[:784, :].set(
        w1.astype(jnp.bfloat16))
    w2_b = w2.astype(jnp.bfloat16)
    w3_b = w3.astype(jnp.bfloat16)
    wo_p = jnp.zeros((H3, NO), jnp.bfloat16).at[:, :n_classes].set(
        wo.astype(jnp.bfloat16))

    b1_f = b1.astype(jnp.float32)
    b2_f = b2.astype(jnp.float32)
    b3_f = b3.astype(jnp.float32)
    # Padded output lanes get a huge negative bias -> exp() underflows to 0.
    bo_p = jnp.full((1, NO), -1e30, jnp.float32).at[:, :n_classes].set(
        bo.astype(jnp.float32))

    # ---- BlockSpecs: x/out tiled over batch, weights/biases resident ----
    def resident(shape):
        return pl.BlockSpec(shape, lambda i: (0, 0))

    out_p = pl.pallas_call(
        fc_model_kernel,
        out_shape=jax.ShapeDtypeStruct((Bp, NO), jnp.float32),
        grid=(n_tiles,),
        in_specs=[
            pl.BlockSpec((tb, K1), lambda i: (i, 0)),       # x tile
            resident((K1, H1)), resident((1, H1)),          # w1, b1
            resident((H1, H2)), resident((1, H2)),          # w2, b2
            resident((H2, H3)), resident((1, H3)),          # w3, b3
            resident((H3, NO)), resident((1, NO)),          # wo, bo
        ],
        out_specs=pl.BlockSpec((tb, NO), lambda i: (i, 0)),
        compiler_params=pltpu.CompilerParams(
            dimension_semantics=("parallel",),
            vmem_limit_bytes=16 << 20,
        ),
    )(x_p, w1_p, b1_f, w2_b, b2_f, w3_b, b3_f, wo_p, bo_p)

    return out_p[:B, :n_classes]


def init_params(key, input_size=784, output_size=10, hidden_layers=(512, 256, 128)):
    """Deterministic init mirroring nn.Linear's U(-1/sqrt(fan_in), 1/sqrt(fan_in)).

    Weights stored [in_features, out_features]; biases [1, out_features].
    """
    sizes = [input_size] + list(hidden_layers) + [output_size]
    params = []
    for fan_in, fan_out in zip(sizes[:-1], sizes[1:]):
        key, kw, kb = jax.random.split(key, 3)
        bound = 1.0 / jnp.sqrt(fan_in)
        w = jax.random.uniform(kw, (fan_in, fan_out), jnp.float32, -bound, bound)
        b = jax.random.uniform(kb, (1, fan_out), jnp.float32, -bound, bound)
        params.append((w, b))
    return params


def reference_forward(x, params):
    """Plain-JAX f32 reference for correctness checking."""
    h = x
    for (w, b) in params[:-1]:
        h = jnp.maximum(h @ w + b, 0.0)
    wo, bo = params[-1]
    logits = h @ wo + bo
    return jax.nn.log_softmax(logits, axis=1)


if __name__ == "__main__":
    key = jax.random.PRNGKey(0)
    key, kx = jax.random.split(key)

    B = 8  # small batch (padded up to a sublane-aligned batch tile inside the wrapper)
    x = jax.random.normal(kx, (B, 784), dtype=jnp.float32)

    params = init_params(key)

    fwd = jax.jit(fc_model_forward)   # fuse the one-time pad/cast ops with the kernel call
    out = fwd(x, params)
    out = jax.block_until_ready(out)

    ref = reference_forward(x, params)
    assert out.shape == (B, 10)
    # bf16 MXU inputs with f32 accumulation -> relaxed tolerance vs f32 reference.
    assert jnp.allclose(out, ref, atol=1e-1, rtol=2e-2), "mismatch vs reference"

    print("KERNEL_OK")
</pallas_src>

<mosaic_0001>
module attributes {stable_mosaic.version = 11 : i64} {
  func.func @fc_model_kernel(%arg0: i32, %arg1: memref<8x896xbf16, #tpu.memory_space<vmem>>, %arg2: memref<896x512xbf16, #tpu.memory_space<vmem>>, %arg3: memref<1x512xf32, #tpu.memory_space<vmem>>, %arg4: memref<512x256xbf16, #tpu.memory_space<vmem>>, %arg5: memref<1x256xf32, #tpu.memory_space<vmem>>, %arg6: memref<256x128xbf16, #tpu.memory_space<vmem>>, %arg7: memref<1x128xf32, #tpu.memory_space<vmem>>, %arg8: memref<128x128xbf16, #tpu.memory_space<vmem>>, %arg9: memref<1x128xf32, #tpu.memory_space<vmem>>, %arg10: memref<8x128xf32, #tpu.memory_space<vmem>>) attributes {dimension_semantics = [#tpu.dimension_semantics<parallel>], iteration_bounds = array<i64: 1>, scalar_prefetch = 0 : i64, scratch_operands = 0 : i64, tpu.core_type = #tpu.core_type<tc>, window_params = [{transform_indices = @transform_0, window_bounds = array<i64: 8, 896>}, {pipeline_mode = #tpu.pipeline_mode<synchronous>, transform_indices = @transform_1, window_bounds = array<i64: 896, 512>}, {pipeline_mode = #tpu.pipeline_mode<synchronous>, transform_indices = @transform_2, window_bounds = array<i64: 1, 512>}, {pipeline_mode = #tpu.pipeline_mode<synchronous>, transform_indices = @transform_3, window_bounds = array<i64: 512, 256>}, {pipeline_mode = #tpu.pipeline_mode<synchronous>, transform_indices = @transform_4, window_bounds = array<i64: 1, 256>}, {pipeline_mode = #tpu.pipeline_mode<synchronous>, transform_indices = @transform_5, window_bounds = array<i64: 256, 128>}, {pipeline_mode = #tpu.pipeline_mode<synchronous>, transform_indices = @transform_6, window_bounds = array<i64: 1, 128>}, {pipeline_mode = #tpu.pipeline_mode<synchronous>, transform_indices = @transform_7, window_bounds = array<i64: 128, 128>}, {pipeline_mode = #tpu.pipeline_mode<synchronous>, transform_indices = @transform_8, window_bounds = array<i64: 1, 128>}, {transform_indices = @transform_9, window_bounds = array<i64: 8, 128>}]} {
    %c0 = arith.constant 0 : index
    %c0_0 = arith.constant 0 : index
    %0 = vector.load %arg1[%c0, %c0_0] : memref<8x896xbf16, #tpu.memory_space<vmem>>, vector<8x896xbf16>
    %c0_1 = arith.constant 0 : index
    %c0_2 = arith.constant 0 : index
    %1 = vector.load %arg2[%c0_1, %c0_2] : memref<896x512xbf16, #tpu.memory_space<vmem>>, vector<896x512xbf16>
    %cst = arith.constant dense<0.000000e+00> : vector<8x512xf32>
    %2 = tpu.matmul %0, %1, %cst {dimension_numbers = #tpu.dot_dimension_numbers<[1], [0], [0], [1], [0, 0, 1, 1], [], []>} : vector<8x896xbf16>, vector<896x512xbf16>, vector<8x512xf32> -> vector<8x512xf32>
    %c0_3 = arith.constant 0 : index
    %c0_4 = arith.constant 0 : index
    %3 = vector.load %arg3[%c0_3, %c0_4] : memref<1x512xf32, #tpu.memory_space<vmem>>, vector<1x512xf32>
    %4 = vector.broadcast %3 : vector<1x512xf32> to vector<8x512xf32>
    %5 = arith.addf %2, %4 : vector<8x512xf32>
    %cst_5 = arith.constant 0.000000e+00 : f32
    %6 = vector.broadcast %cst_5 : f32 to vector<8x512xf32>
    %7 = arith.maximumf %5, %6 : vector<8x512xf32>
    %8 = arith.truncf %7 : vector<8x512xf32> to vector<8x512xbf16>
    %c0_6 = arith.constant 0 : index
    %c0_7 = arith.constant 0 : index
    %9 = vector.load %arg4[%c0_6, %c0_7] : memref<512x256xbf16, #tpu.memory_space<vmem>>, vector<512x256xbf16>
    %cst_8 = arith.constant dense<0.000000e+00> : vector<8x256xf32>
    %10 = tpu.matmul %8, %9, %cst_8 {dimension_numbers = #tpu.dot_dimension_numbers<[1], [0], [0], [1], [0, 0, 1, 1], [], []>} : vector<8x512xbf16>, vector<512x256xbf16>, vector<8x256xf32> -> vector<8x256xf32>
    %c0_9 = arith.constant 0 : index
    %c0_10 = arith.constant 0 : index
    %11 = vector.load %arg5[%c0_9, %c0_10] : memref<1x256xf32, #tpu.memory_space<vmem>>, vector<1x256xf32>
    %12 = vector.broadcast %11 : vector<1x256xf32> to vector<8x256xf32>
    %13 = arith.addf %10, %12 : vector<8x256xf32>
    %cst_11 = arith.constant 0.000000e+00 : f32
    %14 = vector.broadcast %cst_11 : f32 to vector<8x256xf32>
    %15 = arith.maximumf %13, %14 : vector<8x256xf32>
    %16 = arith.truncf %15 : vector<8x256xf32> to vector<8x256xbf16>
    %c0_12 = arith.constant 0 : index
    %c0_13 = arith.constant 0 : index
    %17 = vector.load %arg6[%c0_12, %c0_13] : memref<256x128xbf16, #tpu.memory_space<vmem>>, vector<256x128xbf16>
    %cst_14 = arith.constant dense<0.000000e+00> : vector<8x128xf32>
    %18 = tpu.matmul %16, %17, %cst_14 {dimension_numbers = #tpu.dot_dimension_numbers<[1], [0], [0], [1], [0, 0, 1, 1], [], []>} : vector<8x256xbf16>, vector<256x128xbf16>, vector<8x128xf32> -> vector<8x128xf32>
    %c0_15 = arith.constant 0 : index
    %c0_16 = arith.constant 0 : index
    %19 = vector.load %arg7[%c0_15, %c0_16] : memref<1x128xf32, #tpu.memory_space<vmem>>, vector<1x128xf32>
    %20 = vector.broadcast %19 : vector<1x128xf32> to vector<8x128xf32>
    %21 = arith.addf %18, %20 : vector<8x128xf32>
    %cst_17 = arith.constant 0.000000e+00 : f32
    %22 = vector.broadcast %cst_17 : f32 to vector<8x128xf32>
    %23 = arith.maximumf %21, %22 : vector<8x128xf32>
    %24 = arith.truncf %23 : vector<8x128xf32> to vector<8x128xbf16>
    %c0_18 = arith.constant 0 : index
    %c0_19 = arith.constant 0 : index
    %25 = vector.load %arg8[%c0_18, %c0_19] : memref<128x128xbf16, #tpu.memory_space<vmem>>, vector<128x128xbf16>
    %cst_20 = arith.constant dense<0.000000e+00> : vector<8x128xf32>
    %26 = tpu.matmul %24, %25, %cst_20 {dimension_numbers = #tpu.dot_dimension_numbers<[1], [0], [0], [1], [0, 0, 1, 1], [], []>} : vector<8x128xbf16>, vector<128x128xbf16>, vector<8x128xf32> -> vector<8x128xf32>
    %c0_21 = arith.constant 0 : index
    %c0_22 = arith.constant 0 : index
    %27 = vector.load %arg9[%c0_21, %c0_22] : memref<1x128xf32, #tpu.memory_space<vmem>>, vector<1x128xf32>
    %28 = vector.broadcast %27 : vector<1x128xf32> to vector<8x128xf32>
    %29 = arith.addf %26, %28 : vector<8x128xf32>
    %cst_23 = arith.constant dense<0xFF800000> : vector<8xf32>
    %30 = vector.multi_reduction <maximumf>, %29, %cst_23 [1] : vector<8x128xf32> to vector<8xf32>
    %31 = vector.shape_cast %30 : vector<8xf32> to vector<8x1xf32>
    %32 = vector.broadcast %31 : vector<8x1xf32> to vector<8x128xf32>
    %33 = arith.subf %29, %32 : vector<8x128xf32>
    %34 = math.exp %33 : vector<8x128xf32>
    %cst_24 = arith.constant dense<0.000000e+00> : vector<8xf32>
    %35 = vector.multi_reduction <add>, %34, %cst_24 [1] : vector<8x128xf32> to vector<8xf32>
    %36 = vector.shape_cast %35 : vector<8xf32> to vector<8x1xf32>
    %37 = math.log %36 : vector<8x1xf32>
    %38 = vector.broadcast %37 : vector<8x1xf32> to vector<8x128xf32>
    %39 = arith.subf %33, %38 : vector<8x128xf32>
    %c0_25 = arith.constant 0 : index
    %c0_26 = arith.constant 0 : index
    %40 = vector.load %arg10[%c0_25, %c0_26] : memref<8x128xf32, #tpu.memory_space<vmem>>, vector<8x128xf32>
    tpu.vector_store %arg10[%c0_25, %c0_26], %39 {strides = array<i32>} : memref<8x128xf32, #tpu.memory_space<vmem>>, vector<8x128xf32>,
    return
  }
  func.func @transform_0(%arg0: i32) -> (i32, i32) {
    %c0_i32 = arith.constant 0 : i32
    %c0_i32_0 = arith.constant 0 : i32
    return %arg0, %c0_i32 : i32, i32
  }
  func.func @transform_1(%arg0: i32) -> (i32, i32) {
    %c0_i32 = arith.constant 0 : i32
    %c0_i32_0 = arith.constant 0 : i32
    %c0_i32_1 = arith.constant 0 : i32
    return %c0_i32, %c0_i32_0 : i32, i32
  }
  func.func @transform_2(%arg0: i32) -> (i32, i32) {
    %c0_i32 = arith.constant 0 : i32
    %c0_i32_0 = arith.constant 0 : i32
    %c0_i32_1 = arith.constant 0 : i32
    return %c0_i32, %c0_i32_0 : i32, i32
  }
  func.func @transform_3(%arg0: i32) -> (i32, i32) {
    %c0_i32 = arith.constant 0 : i32
    %c0_i32_0 = arith.constant 0 : i32
    %c0_i32_1 = arith.constant 0 : i32
    return %c0_i32, %c0_i32_0 : i32, i32
  }
  func.func @transform_4(%arg0: i32) -> (i32, i32) {
    %c0_i32 = arith.constant 0 : i32
    %c0_i32_0 = arith.constant 0 : i32
    %c0_i32_1 = arith.constant 0 : i32
    return %c0_i32, %c0_i32_0 : i32, i32
  }
  func.func @transform_5(%arg0: i32) -> (i32, i32) {
    %c0_i32 = arith.constant 0 : i32
    %c0_i32_0 = arith.constant 0 : i32
    %c0_i32_1 = arith.constant 0 : i32
    return %c0_i32, %c0_i32_0 : i32, i32
  }
  func.func @transform_6(%arg0: i32) -> (i32, i32) {
    %c0_i32 = arith.constant 0 : i32
    %c0_i32_0 = arith.constant 0 : i32
    %c0_i32_1 = arith.constant 0 : i32
    return %c0_i32, %c0_i32_0 : i32, i32
  }
  func.func @transform_7(%arg0: i32) -> (i32, i32) {
    %c0_i32 = arith.constant 0 : i32
    %c0_i32_0 = arith.constant 0 : i32
    %c0_i32_1 = arith.constant 0 : i32
    return %c0_i32, %c0_i32_0 : i32, i32
  }
  func.func @transform_8(%arg0: i32) -> (i32, i32) {
    %c0_i32 = arith.constant 0 : i32
    %c0_i32_0 = arith.constant 0 : i32
    %c0_i32_1 = arith.constant 0 : i32
    return %c0_i32, %c0_i32_0 : i32, i32
  }
  func.func @transform_9(%arg0: i32) -> (i32, i32) {
    %c0_i32 = arith.constant 0 : i32
    %c0_i32_0 = arith.constant 0 : i32
    return %arg0, %c0_i32 : i32, i32
  }
}

</mosaic_0001>

<llo_original>
// kernel: fc_model_forward.1
$region0: #{fc_model_forward.1}
  #allocation0 [shape = 'u32[]', space=smem, size = 0x4, offset = 0x4, fixed_abs, tag = 'smem constant byte address 0x4 - core index']
  #allocation1 [shape = 'u32[144,128]{1,0:T(1,128)}', space=vmem, size = 0x12000, scoped, tag = 'internal scratch']
  %s0 = inlined_call_operand.vmem [shape: bf16[8,896], index: 0, kind: input, shape index: {}]
  %s1 = inlined_call_operand.vmem [shape: bf16[896,512], index: 1, kind: input, shape index: {}]
  %s2 = inlined_call_operand.vmem [shape: f32[1,512], index: 2, kind: input, shape index: {}]
  %s3 = inlined_call_operand.vmem [shape: bf16[512,256], index: 3, kind: input, shape index: {}]
  %s4 = inlined_call_operand.vmem [shape: f32[1,256], index: 4, kind: input, shape index: {}]
  %s5 = inlined_call_operand.vmem [shape: bf16[256,128], index: 5, kind: input, shape index: {}]
  %s6 = inlined_call_operand.vmem [shape: f32[1,128], index: 6, kind: input, shape index: {}]
  %s7 = inlined_call_operand.vmem [shape: bf16[128,128], index: 7, kind: input, shape index: {}]
  %s8 = inlined_call_operand.vmem [shape: f32[1,128], index: 8, kind: input, shape index: {}]
  %s9 = inlined_call_operand.hbm [shape: f32[8,128], index: 9, kind: output, shape index: {}]
  %s10 = sld [smem:[#allocation0]]
  $region46: #{fc_model_forward.1} parent=0
    _
  %s12 = ssub.s32 1, %s10
  %s13 = scalar_select 0, %s12, %s10
  $region1: #{fc_model_forward.1} parent=0
    #allocation2 [shape = 'u8[4096]{0}', space=vmem, size = 0x1000, scoped, tag = 'output window, operand 0, single buffered']
    #allocation3 [shape = 's32[1]{0}', space=sflag, size = 0x4, scoped, tag = 'scoped memory for fc_model_forward.1']
    %14 = vsyncpa [#allocation3], 0
    // Predicated region
    $region2: #{fc_model_forward.1} parent=1 // pred_check
      _
    $region3: #{fc_model_forward.1} parent=1 // pred_check_branch
      %16 = sbr.rel (0) target = $region5
    $region4: #{fc_model_forward.1} parent=1 // pred_region
      _
    $region5: #{fc_model_forward.1} parent=1 // pred_fallthru
      _
    // Predicated region
    $region6: #{fc_model_forward.1} parent=1 // pred_check
      _
    $region7: #{fc_model_forward.1} parent=1 // pred_check_branch
      %18 = sbr.rel (0) target = $region9
    $region8: #{fc_model_forward.1} parent=1 // pred_region
      _
    $region9: #{fc_model_forward.1} parent=1 // pred_fallthru
      _
    // Predicated region
    $region10: #{fc_model_forward.1} parent=1 // pred_check
      _
    $region11: #{fc_model_forward.1} parent=1 // pred_check_branch
      %20 = sbr.rel (0) target = $region13
    $region12: #{fc_model_forward.1} parent=1 // pred_region
      _
    $region13: #{fc_model_forward.1} parent=1 // pred_fallthru
      _
    // Predicated region
    $region14: #{fc_model_forward.1} parent=1 // pred_check
      _
    $region15: #{fc_model_forward.1} parent=1 // pred_check_branch
      %22 = sbr.rel (0) target = $region17
    $region16: #{fc_model_forward.1} parent=1 // pred_region
      _
    $region17: #{fc_model_forward.1} parent=1 // pred_fallthru
      _
    // Predicated region
    $region18: #{fc_model_forward.1} parent=1 // pred_check
      _
    $region19: #{fc_model_forward.1} parent=1 // pred_check_branch
      %24 = sbr.rel (0) target = $region21
    $region20: #{fc_model_forward.1} parent=1 // pred_region
      _
    $region21: #{fc_model_forward.1} parent=1 // pred_fallthru
      _
    // Predicated region
    $region22: #{fc_model_forward.1} parent=1 // pred_check
      _
    $region23: #{fc_model_forward.1} parent=1 // pred_check_branch
      %26 = sbr.rel (0) target = $region25
    $region24: #{fc_model_forward.1} parent=1 // pred_region
      _
    $region25: #{fc_model_forward.1} parent=1 // pred_fallthru
      _
    // Predicated region
    $region26: #{fc_model_forward.1} parent=1 // pred_check
      _
    $region27: #{fc_model_forward.1} parent=1 // pred_check_branch
      %28 = sbr.rel (0) target = $region29
    $region28: #{fc_model_forward.1} parent=1 // pred_region
      _
    $region29: #{fc_model_forward.1} parent=1 // pred_fallthru
      _
    // Predicated region
    $region30: #{fc_model_forward.1} parent=1 // pred_check
      _
    $region31: #{fc_model_forward.1} parent=1 // pred_check_branch
      %30 = sbr.rel (0) target = $region33
    $region32: #{fc_model_forward.1} parent=1 // pred_region
      _
    $region33: #{fc_model_forward.1} parent=1 // pred_fallthru
      _
    // Predicated region
    $region34: #{fc_model_forward.1} parent=1 // pred_check
      _
    $region35: #{fc_model_forward.1} parent=1 // pred_check_branch
      %32 = sbr.rel (0) target = $region37
    $region36: #{fc_model_forward.1} parent=1 // pred_region
      _
    $region37: #{fc_model_forward.1} parent=1 // pred_fallthru
      _
    %v34 = vld [vmem:[%s0] sm:$0xff]
    %v35 = vld [vmem:[%s0 + $0x8] sm:$0xff]
    %v36 = vld [vmem:[%s0 + $0x10] sm:$0xff]
    %v37 = vld [vmem:[%s0 + $0x18] sm:$0xf]
    %v38 = vld [vmem:[%s1] sm:$0xff]
    %v39 = vld [vmem:[%s1 + $0x8] sm:$0xff]
    %v40 = vld [vmem:[%s1 + $0x10] sm:$0xff]
    %v41 = vld [vmem:[%s1 + $0x18] sm:$0xff]
    %v42 = vld [vmem:[%s1 + $0x20] sm:$0xff]
    %v43 = vld [vmem:[%s1 + $0x28] sm:$0xff]
    %v44 = vld [vmem:[%s1 + $0x30] sm:$0xff]
    %v45 = vld [vmem:[%s1 + $0x38] sm:$0xff]
    %v46 = vld [vmem:[%s1 + $0x40] sm:$0xff]
    %v47 = vld [vmem:[%s1 + $0x48] sm:$0xff]
    %v48 = vld [vmem:[%s1 + $0x50] sm:$0xff]
    %v49 = vld [vmem:[%s1 + $0x58] sm:$0xff]
    %v50 = vld [vmem:[%s1 + $0x60] sm:$0xff]
    %v51 = vld [vmem:[%s1 + $0x68] sm:$0xff]
    %v52 = vld [vmem:[%s1 + $0x70] sm:$0xff]
    %v53 = vld [vmem:[%s1 + $0x78] sm:$0xff]
    %v54 = vld [vmem:[%s1 + $0x80] sm:$0xff]
    %v55 = vld [vmem:[%s1 + $0x88] sm:$0xff]
    %v56 = vld [vmem:[%s1 + $0x90] sm:$0xff]
    %v57 = vld [vmem:[%s1 + $0x98] sm:$0xff]
    %v58 = vld [vmem:[%s1 + $0xa0] sm:$0xff]
    %v59 = vld [vmem:[%s1 + $0xa8] sm:$0xff]
    %v60 = vld [vmem:[%s1 + $0xb0] sm:$0xff]
    %v61 = vld [vmem:[%s1 + $0xb8] sm:$0xff]
    %v62 = vld [vmem:[%s1 + $0xc0] sm:$0xff]
    %v63 = vld [vmem:[%s1 + $0xc8] sm:$0xff]
    %v64 = vld [vmem:[%s1 + $0xd0] sm:$0xff]
    %v65 = vld [vmem:[%s1 + $0xd8] sm:$0xff]
    %v66 = vld [vmem:[%s1 + $0xe0] sm:$0xff]
    %v67 = vld [vmem:[%s1 + $0xe8] sm:$0xff]
    %v68 = vld [vmem:[%s1 + $0xf0] sm:$0xff]
    %v69 = vld [vmem:[%s1 + $0xf8] sm:$0xff]
    %v70 = vld [vmem:[%s1 + $0x100] sm:$0xff]
    %v71 = vld [vmem:[%s1 + $0x108] sm:$0xff]
    %v72 = vld [vmem:[%s1 + $0x110] sm:$0xff]
    %v73 = vld [vmem:[%s1 + $0x118] sm:$0xff]
    %v74 = vld [vmem:[%s1 + $0x120] sm:$0xff]
    %v75 = vld [vmem:[%s1 + $0x128] sm:$0xff]
    %v76 = vld [vmem:[%s1 + $0x130] sm:$0xff]
    %v77 = vld [vmem:[%s1 + $0x138] sm:$0xff]
    %v78 = vld [vmem:[%s1 + $0x140] sm:$0xff]
    %v79 = vld [vmem:[%s1 + $0x148] sm:$0xff]
    %v80 = vld [vmem:[%s1 + $0x150] sm:$0xff]
    %v81 = vld [vmem:[%s1 + $0x158] sm:$0xff]
    %v82 = vld [vmem:[%s1 + $0x160] sm:$0xff]
    %v83 = vld [vmem:[%s1 + $0x168] sm:$0xff]
    %v84 = vld [vmem:[%s1 + $0x170] sm:$0xff]
    %v85 = vld [vmem:[%s1 + $0x178] sm:$0xff]
    %v86 = vld [vmem:[%s1 + $0x180] sm:$0xff]
    %v87 = vld [vmem:[%s1 + $0x188] sm:$0xff]
    %v88 = vld [vmem:[%s1 + $0x190] sm:$0xff]
    %v89 = vld [vmem:[%s1 + $0x198] sm:$0xff]
    %v90 = vld [vmem:[%s1 + $0x1a0] sm:$0xff]
    %v91 = vld [vmem:[%s1 + $0x1a8] sm:$0xff]
    %v92 = vld [vmem:[%s1 + $0x1b0] sm:$0xff]
    %v93 = vld [vmem:[%s1 + $0x1b8] sm:$0xff]
    %v94 = vld [vmem:[%s1 + $0x1c0] sm:$0xff]
    %v95 = vld [vmem:[%s1 + $0x1c8] sm:$0xff]
    %v96 = vld [vmem:[%s1 + $0x1d0] sm:$0xff]
    %v97 = vld [vmem:[%s1 + $0x1d8] sm:$0xff]
    %v98 = vld [vmem:[%s1 + $0x1e0] sm:$0xff]
    %v99 = vld [vmem:[%s1 + $0x1e8] sm:$0xff]
    %v100 = vld [vmem:[%s1 + $0x1f0] sm:$0xff]
    %v101 = vld [vmem:[%s1 + $0x1f8] sm:$0xff]
    %v102 = vld [vmem:[%s1 + $0x200] sm:$0xff]
    %v103 = vld [vmem:[%s1 + $0x208] sm:$0xff]
    %v104 = vld [vmem:[%s1 + $0x210] sm:$0xff]
    %v105 = vld [vmem:[%s1 + $0x218] sm:$0xff]
    %v106 = vld [vmem:[%s1 + $0x220] sm:$0xff]
    %v107 = vld [vmem:[%s1 + $0x228] sm:$0xff]
    %v108 = vld [vmem:[%s1 + $0x230] sm:$0xff]
    %v109 = vld [vmem:[%s1 + $0x238] sm:$0xff]
    %v110 = vld [vmem:[%s1 + $0x240] sm:$0xff]
    %v111 = vld [vmem:[%s1 + $0x248] sm:$0xff]
    %v112 = vld [vmem:[%s1 + $0x250] sm:$0xff]
    %v113 = vld [vmem:[%s1 + $0x258] sm:$0xff]
    %v114 = vld [vmem:[%s1 + $0x260] sm:$0xff]
    %v115 = vld [vmem:[%s1 + $0x268] sm:$0xff]
    %v116 = vld [vmem:[%s1 + $0x270] sm:$0xff]
    %v117 = vld [vmem:[%s1 + $0x278] sm:$0xff]
    %v118 = vld [vmem:[%s1 + $0x280] sm:$0xff]
    %v119 = vld [vmem:[%s1 + $0x288] sm:$0xff]
    %v120 = vld [vmem:[%s1 + $0x290] sm:$0xff]
    %v121 = vld [vmem:[%s1 + $0x298] sm:$0xff]
    %v122 = vld [vmem:[%s1 + $0x2a0] sm:$0xff]
    %v123 = vld [vmem:[%s1 + $0x2a8] sm:$0xff]
    %v124 = vld [vmem:[%s1 + $0x2b0] sm:$0xff]
    %v125 = vld [vmem:[%s1 + $0x2b8] sm:$0xff]
    %v126 = vld [vmem:[%s1 + $0x2c0] sm:$0xff]
    %v127 = vld [vmem:[%s1 + $0x2c8] sm:$0xff]
    %v128 = vld [vmem:[%s1 + $0x2d0] sm:$0xff]
    %v129 = vld [vmem:[%s1 + $0x2d8] sm:$0xff]
    %v130 = vld [vmem:[%s1 + $0x2e0] sm:$0xff]
    %v131 = vld [vmem:[%s1 + $0x2e8] sm:$0xff]
    %v132 = vld [vmem:[%s1 + $0x2f0] sm:$0xff]
    %v133 = vld [vmem:[%s1 + $0x2f8] sm:$0xff]
    %v134 = vld [vmem:[%s1 + $0x300] sm:$0xff]
    %v135 = vld [vmem:[%s1 + $0x308] sm:$0xff]
    %v136 = vld [vmem:[%s1 + $0x310] sm:$0xff]
    %v137 = vld [vmem:[%s1 + $0x318] sm:$0xff]
    %v138 = vld [vmem:[%s1 + $0x320] sm:$0xff]
    %v139 = vld [vmem:[%s1 + $0x328] sm:$0xff]
    %v140 = vld [vmem:[%s1 + $0x330] sm:$0xff]
    %v141 = vld [vmem:[%s1 + $0x338] sm:$0xff]
    %v142 = vld [vmem:[%s1 + $0x340] sm:$0xff]
    %v143 = vld [vmem:[%s1 + $0x348] sm:$0xff]
    %v144 = vld [vmem:[%s1 + $0x350] sm:$0xff]
    %v145 = vld [vmem:[%s1 + $0x358] sm:$0xff]
    %v146 = vld [vmem:[%s1 + $0x360] sm:$0xff]
    %v147 = vld [vmem:[%s1 + $0x368] sm:$0xff]
    %v148 = vld [vmem:[%s1 + $0x370] sm:$0xff]
    %v149 = vld [vmem:[%s1 + $0x378] sm:$0xff]
    %v150 = vld [vmem:[%s1 + $0x380] sm:$0xff]
    %v151 = vld [vmem:[%s1 + $0x388] sm:$0xff]
    %v152 = vld [vmem:[%s1 + $0x390] sm:$0xff]
    %v153 = vld [vmem:[%s1 + $0x398] sm:$0xff]
    %v154 = vld [vmem:[%s1 + $0x3a0] sm:$0xff]
    %v155 = vld [vmem:[%s1 + $0x3a8] sm:$0xff]
    %v156 = vld [vmem:[%s1 + $0x3b0] sm:$0xff]
    %v157 = vld [vmem:[%s1 + $0x3b8] sm:$0xff]
    %v158 = vld [vmem:[%s1 + $0x3c0] sm:$0xff]
    %v159 = vld [vmem:[%s1 + $0x3c8] sm:$0xff]
    %v160 = vld [vmem:[%s1 + $0x3d0] sm:$0xff]
    %v161 = vld [vmem:[%s1 + $0x3d8] sm:$0xff]
    %v162 = vld [vmem:[%s1 + $0x3e0] sm:$0xff]
    %v163 = vld [vmem:[%s1 + $0x3e8] sm:$0xff]
    %v164 = vld [vmem:[%s1 + $0x3f0] sm:$0xff]
    %v165 = vld [vmem:[%s1 + $0x3f8] sm:$0xff]
    %v166 = vld [vmem:[%s1 + $0x400] sm:$0xff]
    %v167 = vld [vmem:[%s1 + $0x408] sm:$0xff]
    %v168 = vld [vmem:[%s1 + $0x410] sm:$0xff]
    %v169 = vld [vmem:[%s1 + $0x418] sm:$0xff]
    %v170 = vld [vmem:[%s1 + $0x420] sm:$0xff]
    %v171 = vld [vmem:[%s1 + $0x428] sm:$0xff]
    %v172 = vld [vmem:[%s1 + $0x430] sm:$0xff]
    %v173 = vld [vmem:[%s1 + $0x438] sm:$0xff]
    %v174 = vld [vmem:[%s1 + $0x440] sm:$0xff]
    %v175 = vld [vmem:[%s1 + $0x448] sm:$0xff]
    %v176 = vld [vmem:[%s1 + $0x450] sm:$0xff]
    %v177 = vld [vmem:[%s1 + $0x458] sm:$0xff]
    %v178 = vld [vmem:[%s1 + $0x460] sm:$0xff]
    %v179 = vld [vmem:[%s1 + $0x468] sm:$0xff]
    %v180 = vld [vmem:[%s1 + $0x470] sm:$0xff]
    %v181 = vld [vmem:[%s1 + $0x478] sm:$0xff]
    %v182 = vld [vmem:[%s1 + $0x480] sm:$0xff]
    %v183 = vld [vmem:[%s1 + $0x488] sm:$0xff]
    %v184 = vld [vmem:[%s1 + $0x490] sm:$0xff]
    %v185 = vld [vmem:[%s1 + $0x498] sm:$0xff]
    %v186 = vld [vmem:[%s1 + $0x4a0] sm:$0xff]
    %v187 = vld [vmem:[%s1 + $0x4a8] sm:$0xff]
    %v188 = vld [vmem:[%s1 + $0x4b0] sm:$0xff]
    %v189 = vld [vmem:[%s1 + $0x4b8] sm:$0xff]
    %v190 = vld [vmem:[%s1 + $0x4c0] sm:$0xff]
    %v191 = vld [vmem:[%s1 + $0x4c8] sm:$0xff]
    %v192 = vld [vmem:[%s1 + $0x4d0] sm:$0xff]
    %v193 = vld [vmem:[%s1 + $0x4d8] sm:$0xff]
    %v194 = vld [vmem:[%s1 + $0x4e0] sm:$0xff]
    %v195 = vld [vmem:[%s1 + $0x4e8] sm:$0xff]
    %v196 = vld [vmem:[%s1 + $0x4f0] sm:$0xff]
    %v197 = vld [vmem:[%s1 + $0x4f8] sm:$0xff]
    %v198 = vld [vmem:[%s1 + $0x500] sm:$0xff]
    %v199 = vld [vmem:[%s1 + $0x508] sm:$0xff]
    %v200 = vld [vmem:[%s1 + $0x510] sm:$0xff]
    %v201 = vld [vmem:[%s1 + $0x518] sm:$0xff]
    %v202 = vld [vmem:[%s1 + $0x520] sm:$0xff]
    %v203 = vld [vmem:[%s1 + $0x528] sm:$0xff]
    %v204 = vld [vmem:[%s1 + $0x530] sm:$0xff]
    %v205 = vld [vmem:[%s1 + $0x538] sm:$0xff]
    %v206 = vld [vmem:[%s1 + $0x540] sm:$0xff]
    %v207 = vld [vmem:[%s1 + $0x548] sm:$0xff]
    %v208 = vld [vmem:[%s1 + $0x550] sm:$0xff]
    %v209 = vld [vmem:[%s1 + $0x558] sm:$0xff]
    %v210 = vld [vmem:[%s1 + $0x560] sm:$0xff]
    %v211 = vld [vmem:[%s1 + $0x568] sm:$0xff]
    %v212 = vld [vmem:[%s1 + $0x570] sm:$0xff]
    %v213 = vld [vmem:[%s1 + $0x578] sm:$0xff]
    %v214 = vld [vmem:[%s1 + $0x580] sm:$0xff]
    %v215 = vld [vmem:[%s1 + $0x588] sm:$0xff]
    %v216 = vld [vmem:[%s1 + $0x590] sm:$0xff]
    %v217 = vld [vmem:[%s1 + $0x598] sm:$0xff]
    %v218 = vld [vmem:[%s1 + $0x5a0] sm:$0xff]
    %v219 = vld [vmem:[%s1 + $0x5a8] sm:$0xff]
    %v220 = vld [vmem:[%s1 + $0x5b0] sm:$0xff]
    %v221 = vld [vmem:[%s1 + $0x5b8] sm:$0xff]
    %v222 = vld [vmem:[%s1 + $0x5c0] sm:$0xff]
    %v223 = vld [vmem:[%s1 + $0x5c8] sm:$0xff]
    %v224 = vld [vmem:[%s1 + $0x5d0] sm:$0xff]
    %v225 = vld [vmem:[%s1 + $0x5d8] sm:$0xff]
    %v226 = vld [vmem:[%s1 + $0x5e0] sm:$0xff]
    %v227 = vld [vmem:[%s1 + $0x5e8] sm:$0xff]
    %v228 = vld [vmem:[%s1 + $0x5f0] sm:$0xff]
    %v229 = vld [vmem:[%s1 + $0x5f8] sm:$0xff]
    %v230 = vld [vmem:[%s1 + $0x600] sm:$0xff]
    %v231 = vld [vmem:[%s1 + $0x608] sm:$0xff]
    %v232 = vld [vmem:[%s1 + $0x610] sm:$0xff]
    %v233 = vld [vmem:[%s1 + $0x618] sm:$0xff]
    %v234 = vld [vmem:[%s1 + $0x620] sm:$0xff]
    %v235 = vld [vmem:[%s1 + $0x628] sm:$0xff]
    %v236 = vld [vmem:[%s1 + $0x630] sm:$0xff]
    %v237 = vld [vmem:[%s1 + $0x638] sm:$0xff]
    %v238 = vld [vmem:[%s1 + $0x640] sm:$0xff]
    %v239 = vld [vmem:[%s1 + $0x648] sm:$0xff]
    %v240 = vld [vmem:[%s1 + $0x650] sm:$0xff]
    %v241 = vld [vmem:[%s1 + $0x658] sm:$0xff]
    %v242 = vld [vmem:[%s1 + $0x660] sm:$0xff]
    %v243 = vld [vmem:[%s1 + $0x668] sm:$0xff]
    %v244 = vld [vmem:[%s1 + $0x670] sm:$0xff]
    %v245 = vld [vmem:[%s1 + $0x678] sm:$0xff]
    %v246 = vld [vmem:[%s1 + $0x680] sm:$0xff]
    %v247 = vld [vmem:[%s1 + $0x688] sm:$0xff]
    %v248 = vld [vmem:[%s1 + $0x690] sm:$0xff]
    %v249 = vld [vmem:[%s1 + $0x698] sm:$0xff]
    %v250 = vld [vmem:[%s1 + $0x6a0] sm:$0xff]
    %v251 = vld [vmem:[%s1 + $0x6a8] sm:$0xff]
    %v252 = vld [vmem:[%s1 + $0x6b0] sm:$0xff]
    %v253 = vld [vmem:[%s1 + $0x6b8] sm:$0xff]
    %v254 = vld [vmem:[%s1 + $0x6c0] sm:$0xff]
    %v255 = vld [vmem:[%s1 + $0x6c8] sm:$0xff]
    %v256 = vld [vmem:[%s1 + $0x6d0] sm:$0xff]
    %v257 = vld [vmem:[%s1 + $0x6d8] sm:$0xff]
    %v258 = vld [vmem:[%s1 + $0x6e0] sm:$0xff]
    %v259 = vld [vmem:[%s1 + $0x6e8] sm:$0xff]
    %v260 = vld [vmem:[%s1 + $0x6f0] sm:$0xff]
    %v261 = vld [vmem:[%s1 + $0x6f8] sm:$0xff]
    %v262 = vld [vmem:[%s2] sm:$0xf]
    %v264 = vlaneseq
    %v265 = vshrl.u32 %v264, 7
    %v266 = vsub.s32 0, %v265
    %v267 = vrot.slane %v262, %v266
    %v268 = vlaneseq
    %v269 = vshrl.u32 %v268, 7
    %v270 = vsub.s32 1, %v269
    %v271 = vrot.slane %v262, %v270
    %v272 = vlaneseq
    %v273 = vshrl.u32 %v272, 7
    %v274 = vsub.s32 2, %v273
    %v275 = vrot.slane %v262, %v274
    %v276 = vlaneseq
    %v277 = vshrl.u32 %v276, 7
    %v278 = vsub.s32 3, %v277
    %v279 = vrot.slane %v262, %v278
    %v288 = vunpack.c.l.b16 %v34
    %v289 = vunpack.c.h.b16 %v34
    %v290 = vunpack.c.l.b16 %v35
    %v291 = vunpack.c.h.b16 %v35
    %v292 = vunpack.c.l.b16 %v36
    %v293 = vunpack.c.h.b16 %v36
    %v294 = vunpack.c.l.b16 %v37
    %v295 = vpack.c.b16 %v288, %v288
    %v296 = vpack.c.b16 %v289, %v289
    %v297 = vpack.c.b16 %v290, %v290
    %v298 = vpack.c.b16 %v291, %v291
    %v299 = vpack.c.b16 %v292, %v292
    %v300 = vpack.c.b16 %v293, %v293
    %v301 = vpack.c.b16 %v294, %v294
    %v533 = vunpack.c.l.b16 %v38
    %v534 = vunpack.c.h.b16 %v38
    %v535 = vunpack.c.l.b16 %v39
    %v536 = vunpack.c.h.b16 %v39
    %v537 = vunpack.c.l.b16 %v40
    %v538 = vunpack.c.h.b16 %v40
    %v539 = vunpack.c.l.b16 %v41
    %v540 = vunpack.c.h.b16 %v41
    %v541 = vunpack.c.l.b16 %v42
    %v542 = vunpack.c.h.b16 %v42
    %v543 = vunpack.c.l.b16 %v43
    %v544 = vunpack.c.h.b16 %v43
    %v545 = vunpack.c.l.b16 %v44
    %v546 = vunpack.c.h.b16 %v44
    %v547 = vunpack.c.l.b16 %v45
    %v548 = vunpack.c.h.b16 %v45
    %v549 = vunpack.c.l.b16 %v46
    %v550 = vunpack.c.h.b16 %v46
    %v551 = vunpack.c.l.b16 %v47
    %v552 = vunpack.c.h.b16 %v47
    %v553 = vunpack.c.l.b16 %v48
    %v554 = vunpack.c.h.b16 %v48
    %v555 = vunpack.c.l.b16 %v49
    %v556 = vunpack.c.h.b16 %v49
    %v557 = vunpack.c.l.b16 %v50
    %v558 = vunpack.c.h.b16 %v50
    %v559 = vunpack.c.l.b16 %v51
    %v560 = vunpack.c.h.b16 %v51
    %v561 = vunpack.c.l.b16 %v52
    %v562 = vunpack.c.h.b16 %v52
    %v563 = vunpack.c.l.b16 %v53
    %v564 = vunpack.c.h.b16 %v53
    %v565 = vunpack.c.l.b16 %v54
    %v566 = vunpack.c.h.b16 %v54
    %v567 = vunpack.c.l.b16 %v55
    %v568 = vunpack.c.h.b16 %v55
    %v569 = vunpack.c.l.b16 %v56
    %v570 = vunpack.c.h.b16 %v56
    %v571 = vunpack.c.l.b16 %v57
    %v572 = vunpack.c.h.b16 %v57
    %v573 = vunpack.c.l.b16 %v58
    %v574 = vunpack.c.h.b16 %v58
    %v575 = vunpack.c.l.b16 %v59
    %v576 = vunpack.c.h.b16 %v59
    %v577 = vunpack.c.l.b16 %v60
    %v578 = vunpack.c.h.b16 %v60
    %v579 = vunpack.c.l.b16 %v61
    %v580 = vunpack.c.h.b16 %v61
    %v581 = vunpack.c.l.b16 %v62
    %v582 = vunpack.c.h.b16 %v62
    %v583 = vunpack.c.l.b16 %v63
    %v584 = vunpack.c.h.b16 %v63
    %v585 = vunpack.c.l.b16 %v64
    %v586 = vunpack.c.h.b16 %v64
    %v587 = vunpack.c.l.b16 %v65
    %v588 = vunpack.c.h.b16 %v65
    %v589 = vunpack.c.l.b16 %v66
    %v590 = vunpack.c.h.b16 %v66
    %v591 = vunpack.c.l.b16 %v67
    %v592 = vunpack.c.h.b16 %v67
    %v593 = vunpack.c.l.b16 %v68
    %v594 = vunpack.c.h.b16 %v68
    %v595 = vunpack.c.l.b16 %v69
    %v596 = vunpack.c.h.b16 %v69
    %v597 = vunpack.c.l.b16 %v70
    %v598 = vunpack.c.h.b16 %v70
    %v599 = vunpack.c.l.b16 %v71
    %v600 = vunpack.c.h.b16 %v71
    %v601 = vunpack.c.l.b16 %v72
    %v602 = vunpack.c.h.b16 %v72
    %v603 = vunpack.c.l.b16 %v73
    %v604 = vunpack.c.h.b16 %v73
    %v605 = vunpack.c.l.b16 %v74
    %v606 = vunpack.c.h.b16 %v74
    %v607 = vunpack.c.l.b16 %v75
    %v608 = vunpack.c.h.b16 %v75
    %v609 = vunpack.c.l.b16 %v76
    %v610 = vunpack.c.h.b16 %v76
    %v611 = vunpack.c.l.b16 %v77
    %v612 = vunpack.c.h.b16 %v77
    %v613 = vunpack.c.l.b16 %v78
    %v614 = vunpack.c.h.b16 %v78
    %v615 = vunpack.c.l.b16 %v79
    %v616 = vunpack.c.h.b16 %v79
    %v617 = vunpack.c.l.b16 %v80
    %v618 = vunpack.c.h.b16 %v80
    %v619 = vunpack.c.l.b16 %v81
    %v620 = vunpack.c.h.b16 %v81
    %v621 = vunpack.c.l.b16 %v82
    %v622 = vunpack.c.h.b16 %v82
    %v623 = vunpack.c.l.b16 %v83
    %v624 = vunpack.c.h.b16 %v83
    %v625 = vunpack.c.l.b16 %v84
    %v626 = vunpack.c.h.b16 %v84
    %v627 = vunpack.c.l.b16 %v85
    %v628 = vunpack.c.h.b16 %v85
    %v629 = vunpack.c.l.b16 %v86
    %v630 = vunpack.c.h.b16 %v86
    %v631 = vunpack.c.l.b16 %v87
    %v632 = vunpack.c.h.b16 %v87
    %v633 = vunpack.c.l.b16 %v88
    %v634 = vunpack.c.h.b16 %v88
    %v635 = vunpack.c.l.b16 %v89
    %v636 = vunpack.c.h.b16 %v89
    %v637 = vunpack.c.l.b16 %v90
    %v638 = vunpack.c.h.b16 %v90
    %v639 = vunpack.c.l.b16 %v91
    %v640 = vunpack.c.h.b16 %v91
    %v641 = vunpack.c.l.b16 %v92
    %v642 = vunpack.c.h.b16 %v92
    %v643 = vunpack.c.l.b16 %v93
    %v644 = vunpack.c.h.b16 %v93
    %v645 = vunpack.c.l.b16 %v94
    %v646 = vunpack.c.h.b16 %v94
    %v647 = vunpack.c.l.b16 %v95
    %v648 = vunpack.c.h.b16 %v95
    %v649 = vunpack.c.l.b16 %v96
    %v650 = vunpack.c.h.b16 %v96
    %v651 = vunpack.c.l.b16 %v97
    %v652 = vunpack.c.h.b16 %v97
    %v653 = vunpack.c.l.b16 %v98
    %v654 = vunpack.c.h.b16 %v98
    %v655 = vunpack.c.l.b16 %v99
    %v656 = vunpack.c.h.b16 %v99
    %v657 = vunpack.c.l.b16 %v100
    %v658 = vunpack.c.h.b16 %v100
    %v659 = vunpack.c.l.b16 %v101
    %v660 = vunpack.c.h.b16 %v101
    %v661 = vunpack.c.l.b16 %v102
    %v662 = vunpack.c.h.b16 %v102
    %v663 = vunpack.c.l.b16 %v103
    %v664 = vunpack.c.h.b16 %v103
    %v665 = vunpack.c.l.b16 %v104
    %v666 = vunpack.c.h.b16 %v104
    %v667 = vunpack.c.l.b16 %v105
    %v668 = vunpack.c.h.b16 %v105
    %v669 = vunpack.c.l.b16 %v106
    %v670 = vunpack.c.h.b16 %v106
    %v671 = vunpack.c.l.b16 %v107
    %v672 = vunpack.c.h.b16 %v107
    %v673 = vunpack.c.l.b16 %v108
    %v674 = vunpack.c.h.b16 %v108
    %v675 = vunpack.c.l.b16 %v109
    %v676 = vunpack.c.h.b16 %v109
    %v677 = vunpack.c.l.b16 %v110
    %v678 = vunpack.c.h.b16 %v110
    %v679 = vunpack.c.l.b16 %v111
    %v680 = vunpack.c.h.b16 %v111
    %v681 = vunpack.c.l.b16 %v112
    %v682 = vunpack.c.h.b16 %v112
    %v683 = vunpack.c.l.b16 %v113
    %v684 = vunpack.c.h.b16 %v113
    %v685 = vunpack.c.l.b16 %v114
    %v686 = vunpack.c.h.b16 %v114
    %v687 = vunpack.c.l.b16 %v115
    %v688 = vunpack.c.h.b16 %v115
    %v689 = vunpack.c.l.b16 %v116
    %v690 = vunpack.c.h.b16 %v116
    %v691 = vunpack.c.l.b16 %v117
    %v692 = vunpack.c.h.b16 %v117
    %v693 = vunpack.c.l.b16 %v118
    %v694 = vunpack.c.h.b16 %v118
    %v695 = vunpack.c.l.b16 %v119
    %v696 = vunpack.c.h.b16 %v119
    %v697 = vunpack.c.l.b16 %v120
    %v698 = vunpack.c.h.b16 %v120
    %v699 = vunpack.c.l.b16 %v121
    %v700 = vunpack.c.h.b16 %v121
    %v701 = vunpack.c.l.b16 %v122
    %v702 = vunpack.c.h.b16 %v122
    %v703 = vunpack.c.l.b16 %v123
    %v704 = vunpack.c.h.b16 %v123
    %v705 = vunpack.c.l.b16 %v124
    %v706 = vunpack.c.h.b16 %v124
    %v707 = vunpack.c.l.b16 %v125
    %v708 = vunpack.c.h.b16 %v125
    %v709 = vunpack.c.l.b16 %v126
    %v710 = vunpack.c.h.b16 %v126
    %v711 = vunpack.c.l.b16 %v127
    %v712 = vunpack.c.h.b16 %v127
    %v713 = vunpack.c.l.b16 %v128
    %v714 = vunpack.c.h.b16 %v128
    %v715 = vunpack.c.l.b16 %v129
    %v716 = vunpack.c.h.b16 %v129
    %v717 = vunpack.c.l.b16 %v130
    %v718 = vunpack.c.h.b16 %v130
    %v719 = vunpack.c.l.b16 %v131
    %v720 = vunpack.c.h.b16 %v131
    %v721 = vunpack.c.l.b16 %v132
    %v722 = vunpack.c.h.b16 %v132
    %v723 = vunpack.c.l.b16 %v133
    %v724 = vunpack.c.h.b16 %v133
    %v725 = vunpack.c.l.b16 %v134
    %v726 = vunpack.c.h.b16 %v134
    %v727 = vunpack.c.l.b16 %v135
    %v728 = vunpack.c.h.b16 %v135
    %v729 = vunpack.c.l.b16 %v136
    %v730 = vunpack.c.h.b16 %v136
    %v731 = vunpack.c.l.b16 %v137
    %v732 = vunpack.c.h.b16 %v137
    %v733 = vunpack.c.l.b16 %v138
    %v734 = vunpack.c.h.b16 %v138
    %v735 = vunpack.c.l.b16 %v139
    %v736 = vunpack.c.h.b16 %v139
    %v737 = vunpack.c.l.b16 %v140
    %v738 = vunpack.c.h.b16 %v140
    %v739 = vunpack.c.l.b16 %v141
    %v740 = vunpack.c.h.b16 %v141
    %v741 = vunpack.c.l.b16 %v142
    %v742 = vunpack.c.h.b16 %v142
    %v743 = vunpack.c.l.b16 %v143
    %v744 = vunpack.c.h.b16 %v143
    %v745 = vunpack.c.l.b16 %v144
    %v746 = vunpack.c.h.b16 %v144
    %v747 = vunpack.c.l.b16 %v145
    %v748 = vunpack.c.h.b16 %v145
    %v749 = vunpack.c.l.b16 %v146
    %v750 = vunpack.c.h.b16 %v146
    %v751 = vunpack.c.l.b16 %v147
    %v752 = vunpack.c.h.b16 %v147
    %v753 = vunpack.c.l.b16 %v148
    %v754 = vunpack.c.h.b16 %v148
    %v755 = vunpack.c.l.b16 %v149
    %v756 = vunpack.c.h.b16 %v149
    %v757 = vunpack.c.l.b16 %v150
    %v758 = vunpack.c.h.b16 %v150
    %v759 = vunpack.c.l.b16 %v151
    %v760 = vunpack.c.h.b16 %v151
    %v761 = vunpack.c.l.b16 %v152
    %v762 = vunpack.c.h.b16 %v152
    %v763 = vunpack.c.l.b16 %v153
    %v764 = vunpack.c.h.b16 %v153
    %v765 = vunpack.c.l.b16 %v154
    %v766 = vunpack.c.h.b16 %v154
    %v767 = vunpack.c.l.b16 %v155
    %v768 = vunpack.c.h.b16 %v155
    %v769 = vunpack.c.l.b16 %v156
    %v770 = vunpack.c.h.b16 %v156
    %v771 = vunpack.c.l.b16 %v157
    %v772 = vunpack.c.h.b16 %v157
    %v773 = vunpack.c.l.b16 %v158
    %v774 = vunpack.c.h.b16 %v158
    %v775 = vunpack.c.l.b16 %v159
    %v776 = vunpack.c.h.b16 %v159
    %v777 = vunpack.c.l.b16 %v160
    %v778 = vunpack.c.h.b16 %v160
    %v779 = vunpack.c.l.b16 %v161
    %v780 = vunpack.c.h.b16 %v161
    %v781 = vunpack.c.l.b16 %v162
    %v782 = vunpack.c.h.b16 %v162
    %v783 = vunpack.c.l.b16 %v163
    %v784 = vunpack.c.h.b16 %v163
    %v785 = vunpack.c.l.b16 %v164
    %v786 = vunpack.c.h.b16 %v164
    %v787 = vunpack.c.l.b16 %v165
    %v788 = vunpack.c.h.b16 %v165
    %v789 = vunpack.c.l.b16 %v166
    %v790 = vunpack.c.h.b16 %v166
    %v791 = vunpack.c.l.b16 %v167
    %v792 = vunpack.c.h.b16 %v167
    %v793 = vunpack.c.l.b16 %v168
    %v794 = vunpack.c.h.b16 %v168
    %v795 = vunpack.c.l.b16 %v169
    %v796 = vunpack.c.h.b16 %v169
    %v797 = vunpack.c.l.b16 %v170
    %v798 = vunpack.c.h.b16 %v170
    %v799 = vunpack.c.l.b16 %v171
    %v800 = vunpack.c.h.b16 %v171
    %v801 = vunpack.c.l.b16 %v172
    %v802 = vunpack.c.h.b16 %v172
    %v803 = vunpack.c.l.b16 %v173
    %v804 = vunpack.c.h.b16 %v173
    %v805 = vunpack.c.l.b16 %v174
    %v806 = vunpack.c.h.b16 %v174
    %v807 = vunpack.c.l.b16 %v175
    %v808 = vunpack.c.h.b16 %v175
    %v809 = vunpack.c.l.b16 %v176
    %v810 = vunpack.c.h.b16 %v176
    %v811 = vunpack.c.l.b16 %v177
    %v812 = vunpack.c.h.b16 %v177
    %v813 = vunpack.c.l.b16 %v178
    %v814 = vunpack.c.h.b16 %v178
    %v815 = vunpack.c.l.b16 %v179
    %v816 = vunpack.c.h.b16 %v179
    %v817 = vunpack.c.l.b16 %v180
    %v818 = vunpack.c.h.b16 %v180
    %v819 = vunpack.c.l.b16 %v181
    %v820 = vunpack.c.h.b16 %v181
    %v821 = vunpack.c.l.b16 %v182
    %v822 = vunpack.c.h.b16 %v182
    %v823 = vunpack.c.l.b16 %v183
    %v824 = vunpack.c.h.b16 %v183
    %v825 = vunpack.c.l.b16 %v184
    %v826 = vunpack.c.h.b16 %v184
    %v827 = vunpack.c.l.b16 %v185
    %v828 = vunpack.c.h.b16 %v185
    %v829 = vunpack.c.l.b16 %v186
    %v830 = vunpack.c.h.b16 %v186
    %v831 = vunpack.c.l.b16 %v187
    %v832 = vunpack.c.h.b16 %v187
    %v833 = vunpack.c.l.b16 %v188
    %v834 = vunpack.c.h.b16 %v188
    %v835 = vunpack.c.l.b16 %v189
    %v836 = vunpack.c.h.b16 %v189
    %v837 = vunpack.c.l.b16 %v190
    %v838 = vunpack.c.h.b16 %v190
    %v839 = vunpack.c.l.b16 %v191
    %v840 = vunpack.c.h.b16 %v191
    %v841 = vunpack.c.l.b16 %v192
    %v842 = vunpack.c.h.b16 %v192
    %v843 = vunpack.c.l.b16 %v193
    %v844 = vunpack.c.h.b16 %v193
    %v845 = vunpack.c.l.b16 %v194
    %v846 = vunpack.c.h.b16 %v194
    %v847 = vunpack.c.l.b16 %v195
    %v848 = vunpack.c.h.b16 %v195
    %v849 = vunpack.c.l.b16 %v196
    %v850 = vunpack.c.h.b16 %v196
    %v851 = vunpack.c.l.b16 %v197
    %v852 = vunpack.c.h.b16 %v197
    %v853 = vunpack.c.l.b16 %v198
    %v854 = vunpack.c.h.b16 %v198
    %v855 = vunpack.c.l.b16 %v199
    %v856 = vunpack.c.h.b16 %v199
    %v857 = vunpack.c.l.b16 %v200
    %v858 = vunpack.c.h.b16 %v200
    %v859 = vunpack.c.l.b16 %v201
    %v860 = vunpack.c.h.b16 %v201
    %v861 = vunpack.c.l.b16 %v202
    %v862 = vunpack.c.h.b16 %v202
    %v863 = vunpack.c.l.b16 %v203
    %v864 = vunpack.c.h.b16 %v203
    %v865 = vunpack.c.l.b16 %v204
    %v866 = vunpack.c.h.b16 %v204
    %v867 = vunpack.c.l.b16 %v205
    %v868 = vunpack.c.h.b16 %v205
    %v869 = vunpack.c.l.b16 %v206
    %v870 = vunpack.c.h.b16 %v206
    %v871 = vunpack.c.l.b16 %v207
    %v872 = vunpack.c.h.b16 %v207
    %v873 = vunpack.c.l.b16 %v208
    %v874 = vunpack.c.h.b16 %v208
    %v875 = vunpack.c.l.b16 %v209
    %v876 = vunpack.c.h.b16 %v209
    %v877 = vunpack.c.l.b16 %v210
    %v878 = vunpack.c.h.b16 %v210
    %v879 = vunpack.c.l.b16 %v211
    %v880 = vunpack.c.h.b16 %v211
    %v881 = vunpack.c.l.b16 %v212
    %v882 = vunpack.c.h.b16 %v212
    %v883 = vunpack.c.l.b16 %v213
    %v884 = vunpack.c.h.b16 %v213
    %v885 = vunpack.c.l.b16 %v214
    %v886 = vunpack.c.h.b16 %v214
    %v887 = vunpack.c.l.b16 %v215
    %v888 = vunpack.c.h.b16 %v215
    %v889 = vunpack.c.l.b16 %v216
    %v890 = vunpack.c.h.b16 %v216
    %v891 = vunpack.c.l.b16 %v217
    %v892 = vunpack.c.h.b16 %v217
    %v893 = vunpack.c.l.b16 %v218
    %v894 = vunpack.c.h.b16 %v218
    %v895 = vunpack.c.l.b16 %v219
    %v896 = vunpack.c.h.b16 %v219
    %v897 = vunpack.c.l.b16 %v220
    %v898 = vunpack.c.h.b16 %v220
    %v899 = vunpack.c.l.b16 %v221
    %v900 = vunpack.c.h.b16 %v221
    %v901 = vunpack.c.l.b16 %v222
    %v902 = vunpack.c.h.b16 %v222
    %v903 = vunpack.c.l.b16 %v223
    %v904 = vunpack.c.h.b16 %v223
    %v905 = vunpack.c.l.b16 %v224
    %v906 = vunpack.c.h.b16 %v224
    %v907 = vunpack.c.l.b16 %v225
    %v908 = vunpack.c.h.b16 %v225
    %v909 = vunpack.c.l.b16 %v226
    %v910 = vunpack.c.h.b16 %v226
    %v911 = vunpack.c.l.b16 %v227
    %v912 = vunpack.c.h.b16 %v227
    %v913 = vunpack.c.l.b16 %v228
    %v914 = vunpack.c.h.b16 %v228
    %v915 = vunpack.c.l.b16 %v229
    %v916 = vunpack.c.h.b16 %v229
    %v917 = vunpack.c.l.b16 %v230
    %v918 = vunpack.c.h.b16 %v230
    %v919 = vunpack.c.l.b16 %v231
    %v920 = vunpack.c.h.b16 %v231
    %v921 = vunpack.c.l.b16 %v232
    %v922 = vunpack.c.h.b16 %v232
    %v923 = vunpack.c.l.b16 %v233
    %v924 = vunpack.c.h.b16 %v233
    %v925 = vunpack.c.l.b16 %v234
    %v926 = vunpack.c.h.b16 %v234
    %v927 = vunpack.c.l.b16 %v235
    %v928 = vunpack.c.h.b16 %v235
    %v929 = vunpack.c.l.b16 %v236
    %v930 = vunpack.c.h.b16 %v236
    %v931 = vunpack.c.l.b16 %v237
    %v932 = vunpack.c.h.b16 %v237
    %v933 = vunpack.c.l.b16 %v238
    %v934 = vunpack.c.h.b16 %v238
    %v935 = vunpack.c.l.b16 %v239
    %v936 = vunpack.c.h.b16 %v239
    %v937 = vunpack.c.l.b16 %v240
    %v938 = vunpack.c.h.b16 %v240
    %v939 = vunpack.c.l.b16 %v241
    %v940 = vunpack.c.h.b16 %v241
    %v941 = vunpack.c.l.b16 %v242
    %v942 = vunpack.c.h.b16 %v242
    %v943 = vunpack.c.l.b16 %v243
    %v944 = vunpack.c.h.b16 %v243
    %v945 = vunpack.c.l.b16 %v244
    %v946 = vunpack.c.h.b16 %v244
    %v947 = vunpack.c.l.b16 %v245
    %v948 = vunpack.c.h.b16 %v245
    %v949 = vunpack.c.l.b16 %v246
    %v950 = vunpack.c.h.b16 %v246
    %v951 = vunpack.c.l.b16 %v247
    %v952 = vunpack.c.h.b16 %v247
    %v953 = vunpack.c.l.b16 %v248
    %v954 = vunpack.c.h.b16 %v248
    %v955 = vunpack.c.l.b16 %v249
    %v956 = vunpack.c.h.b16 %v249
    %v957 = vunpack.c.l.b16 %v250
    %v958 = vunpack.c.h.b16 %v250
    %v959 = vunpack.c.l.b16 %v251
    %v960 = vunpack.c.h.b16 %v251
    %v961 = vunpack.c.l.b16 %v252
    %v962 = vunpack.c.h.b16 %v252
    %v963 = vunpack.c.l.b16 %v253
    %v964 = vunpack.c.h.b16 %v253
    %v965 = vunpack.c.l.b16 %v254
    %v966 = vunpack.c.h.b16 %v254
    %v967 = vunpack.c.l.b16 %v255
    %v968 = vunpack.c.h.b16 %v255
    %v969 = vunpack.c.l.b16 %v256
    %v970 = vunpack.c.h.b16 %v256
    %v971 = vunpack.c.l.b16 %v257
    %v972 = vunpack.c.h.b16 %v257
    %v973 = vunpack.c.l.b16 %v258
    %v974 = vunpack.c.h.b16 %v258
    %v975 = vunpack.c.l.b16 %v259
    %v976 = vunpack.c.h.b16 %v259
    %v977 = vunpack.c.l.b16 %v260
    %v978 = vunpack.c.h.b16 %v260
    %v979 = vunpack.c.l.b16 %v261
    %v980 = vunpack.c.h.b16 %v261
    %v981 = vpack.c.b16 %v537, %v533
    %v982 = vpack.c.b16 %v538, %v534
    %v983 = vpack.c.b16 %v539, %v535
    %v984 = vpack.c.b16 %v540, %v536
    %v985 = vpack.c.b16 %v545, %v541
    %v986 = vpack.c.b16 %v546, %v542
    %v987 = vpack.c.b16 %v547, %v543
    %v988 = vpack.c.b16 %v548, %v544
    %v989 = vpack.c.b16 %v553, %v549
    %v990 = vpack.c.b16 %v554, %v550
    %v991 = vpack.c.b16 %v555, %v551
    %v992 = vpack.c.b16 %v556, %v552
    %v993 = vpack.c.b16 %v561, %v557
    %v994 = vpack.c.b16 %v562, %v558
    %v995 = vpack.c.b16 %v563, %v559
    %v996 = vpack.c.b16 %v564, %v560
    %v997 = vpack.c.b16 %v569, %v565
    %v998 = vpack.c.b16 %v570, %v566
    %v999 = vpack.c.b16 %v571, %v567
    %v1000 = vpack.c.b16 %v572, %v568
    %v1001 = vpack.c.b16 %v577, %v573
    %v1002 = vpack.c.b16 %v578, %v574
    %v1003 = vpack.c.b16 %v579, %v575
    %v1004 = vpack.c.b16 %v580, %v576
    %v1005 = vpack.c.b16 %v585, %v581
    %v1006 = vpack.c.b16 %v586, %v582
    %v1007 = vpack.c.b16 %v587, %v583
    %v1008 = vpack.c.b16 %v588, %v584
    %v1009 = vpack.c.b16 %v593, %v589
    %v1010 = vpack.c.b16 %v594, %v590
    %v1011 = vpack.c.b16 %v595, %v591
    %v1012 = vpack.c.b16 %v596, %v592
    %v1013 = vpack.c.b16 %v601, %v597
    %v1014 = vpack.c.b16 %v602, %v598
    %v1015 = vpack.c.b16 %v603, %v599
    %v1016 = vpack.c.b16 %v604, %v600
    %v1017 = vpack.c.b16 %v609, %v605
    %v1018 = vpack.c.b16 %v610, %v606
    %v1019 = vpack.c.b16 %v611, %v607
    %v1020 = vpack.c.b16 %v612, %v608
    %v1021 = vpack.c.b16 %v617, %v613
    %v1022 = vpack.c.b16 %v618, %v614
    %v1023 = vpack.c.b16 %v619, %v615
    %v1024 = vpack.c.b16 %v620, %v616
    %v1025 = vpack.c.b16 %v625, %v621
    %v1026 = vpack.c.b16 %v626, %v622
    %v1027 = vpack.c.b16 %v627, %v623
    %v1028 = vpack.c.b16 %v628, %v624
    %v1029 = vpack.c.b16 %v633, %v629
    %v1030 = vpack.c.b16 %v634, %v630
    %v1031 = vpack.c.b16 %v635, %v631
    %v1032 = vpack.c.b16 %v636, %v632
    %v1033 = vpack.c.b16 %v641, %v637
    %v1034 = vpack.c.b16 %v642, %v638
    %v1035 = vpack.c.b16 %v643, %v639
    %v1036 = vpack.c.b16 %v644, %v640
    %v1037 = vpack.c.b16 %v649, %v645
    %v1038 = vpack.c.b16 %v650, %v646
    %v1039 = vpack.c.b16 %v651, %v647
    %v1040 = vpack.c.b16 %v652, %v648
    %v1041 = vpack.c.b16 %v657, %v653
    %v1042 = vpack.c.b16 %v658, %v654
    %v1043 = vpack.c.b16 %v659, %v655
    %v1044 = vpack.c.b16 %v660, %v656
    %v1045 = vpack.c.b16 %v665, %v661
    %v1046 = vpack.c.b16 %v666, %v662
    %v1047 = vpack.c.b16 %v667, %v663
    %v1048 = vpack.c.b16 %v668, %v664
    %v1049 = vpack.c.b16 %v673, %v669
    %v1050 = vpack.c.b16 %v674, %v670
    %v1051 = vpack.c.b16 %v675, %v671
    %v1052 = vpack.c.b16 %v676, %v672
    %v1053 = vpack.c.b16 %v681, %v677
    %v1054 = vpack.c.b16 %v682, %v678
    %v1055 = vpack.c.b16 %v683, %v679
    %v1056 = vpack.c.b16 %v684, %v680
    %v1057 = vpack.c.b16 %v689, %v685
    %v1058 = vpack.c.b16 %v690, %v686
    %v1059 = vpack.c.b16 %v691, %v687
    %v1060 = vpack.c.b16 %v692, %v688
    %v1061 = vpack.c.b16 %v697, %v693
    %v1062 = vpack.c.b16 %v698, %v694
    %v1063 = vpack.c.b16 %v699, %v695
    %v1064 = vpack.c.b16 %v700, %v696
    %v1065 = vpack.c.b16 %v705, %v701
    %v1066 = vpack.c.b16 %v706, %v702
    %v1067 = vpack.c.b16 %v707, %v703
    %v1068 = vpack.c.b16 %v708, %v704
    %v1069 = vpack.c.b16 %v713, %v709
    %v1070 = vpack.c.b16 %v714, %v710
    %v1071 = vpack.c.b16 %v715, %v711
    %v1072 = vpack.c.b16 %v716, %v712
    %v1073 = vpack.c.b16 %v721, %v717
    %v1074 = vpack.c.b16 %v722, %v718
    %v1075 = vpack.c.b16 %v723, %v719
    %v1076 = vpack.c.b16 %v724, %v720
    %v1077 = vpack.c.b16 %v729, %v725
    %v1078 = vpack.c.b16 %v730, %v726
    %v1079 = vpack.c.b16 %v731, %v727
    %v1080 = vpack.c.b16 %v732, %v728
    %v1081 = vpack.c.b16 %v737, %v733
    %v1082 = vpack.c.b16 %v738, %v734
    %v1083 = vpack.c.b16 %v739, %v735
    %v1084 = vpack.c.b16 %v740, %v736
    %v1085 = vpack.c.b16 %v745, %v741
    %v1086 = vpack.c.b16 %v746, %v742
    %v1087 = vpack.c.b16 %v747, %v743
    %v1088 = vpack.c.b16 %v748, %v744
    %v1089 = vpack.c.b16 %v753, %v749
    %v1090 = vpack.c.b16 %v754, %v750
    %v1091 = vpack.c.b16 %v755, %v751
    %v1092 = vpack.c.b16 %v756, %v752
    %v1093 = vpack.c.b16 %v761, %v757
    %v1094 = vpack.c.b16 %v762, %v758
    %v1095 = vpack.c.b16 %v763, %v759
    %v1096 = vpack.c.b16 %v764, %v760
    %v1097 = vpack.c.b16 %v769, %v765
    %v1098 = vpack.c.b16 %v770, %v766
    %v1099 = vpack.c.b16 %v771, %v767
    %v1100 = vpack.c.b16 %v772, %v768
    %v1101 = vpack.c.b16 %v777, %v773
    %v1102 = vpack.c.b16 %v778, %v774
    %v1103 = vpack.c.b16 %v779, %v775
    %v1104 = vpack.c.b16 %v780, %v776
    %v1105 = vpack.c.b16 %v785, %v781
    %v1106 = vpack.c.b16 %v786, %v782
    %v1107 = vpack.c.b16 %v787, %v783
    %v1108 = vpack.c.b16 %v788, %v784
    %v1109 = vpack.c.b16 %v793, %v789
    %v1110 = vpack.c.b16 %v794, %v790
    %v1111 = vpack.c.b16 %v795, %v791
    %v1112 = vpack.c.b16 %v796, %v792
    %v1113 = vpack.c.b16 %v801, %v797
    %v1114 = vpack.c.b16 %v802, %v798
    %v1115 = vpack.c.b16 %v803, %v799
    %v1116 = vpack.c.b16 %v804, %v800
    %v1117 = vpack.c.b16 %v809, %v805
    %v1118 = vpack.c.b16 %v810, %v806
    %v1119 = vpack.c.b16 %v811, %v807
    %v1120 = vpack.c.b16 %v812, %v808
    %v1121 = vpack.c.b16 %v817, %v813
    %v1122 = vpack.c.b16 %v818, %v814
    %v1123 = vpack.c.b16 %v819, %v815
    %v1124 = vpack.c.b16 %v820, %v816
    %v1125 = vpack.c.b16 %v825, %v821
    %v1126 = vpack.c.b16 %v826, %v822
    %v1127 = vpack.c.b16 %v827, %v823
    %v1128 = vpack.c.b16 %v828, %v824
    %v1129 = vpack.c.b16 %v833, %v829
    %v1130 = vpack.c.b16 %v834, %v830
    %v1131 = vpack.c.b16 %v835, %v831
    %v1132 = vpack.c.b16 %v836, %v832
    %v1133 = vpack.c.b16 %v841, %v837
    %v1134 = vpack.c.b16 %v842, %v838
    %v1135 = vpack.c.b16 %v843, %v839
    %v1136 = vpack.c.b16 %v844, %v840
    %v1137 = vpack.c.b16 %v849, %v845
    %v1138 = vpack.c.b16 %v850, %v846
    %v1139 = vpack.c.b16 %v851, %v847
    %v1140 = vpack.c.b16 %v852, %v848
    %v1141 = vpack.c.b16 %v857, %v853
    %v1142 = vpack.c.b16 %v858, %v854
    %v1143 = vpack.c.b16 %v859, %v855
    %v1144 = vpack.c.b16 %v860, %v856
    %v1145 = vpack.c.b16 %v865, %v861
    %v1146 = vpack.c.b16 %v866, %v862
    %v1147 = vpack.c.b16 %v867, %v863
    %v1148 = vpack.c.b16 %v868, %v864
    %v1149 = vpack.c.b16 %v873, %v869
    %v1150 = vpack.c.b16 %v874, %v870
    %v1151 = vpack.c.b16 %v875, %v871
    %v1152 = vpack.c.b16 %v876, %v872
    %v1153 = vpack.c.b16 %v881, %v877
    %v1154 = vpack.c.b16 %v882, %v878
    %v1155 = vpack.c.b16 %v883, %v879
    %v1156 = vpack.c.b16 %v884, %v880
    %v1157 = vpack.c.b16 %v889, %v885
    %v1158 = vpack.c.b16 %v890, %v886
    %v1159 = vpack.c.b16 %v891, %v887
    %v1160 = vpack.c.b16 %v892, %v888
    %v1161 = vpack.c.b16 %v897, %v893
    %v1162 = vpack.c.b16 %v898, %v894
    %v1163 = vpack.c.b16 %v899, %v895
    %v1164 = vpack.c.b16 %v900, %v896
    %v1165 = vpack.c.b16 %v905, %v901
    %v1166 = vpack.c.b16 %v906, %v902
    %v1167 = vpack.c.b16 %v907, %v903
    %v1168 = vpack.c.b16 %v908, %v904
    %v1169 = vpack.c.b16 %v913, %v909
    %v1170 = vpack.c.b16 %v914, %v910
    %v1171 = vpack.c.b16 %v915, %v911
    %v1172 = vpack.c.b16 %v916, %v912
    %v1173 = vpack.c.b16 %v921, %v917
    %v1174 = vpack.c.b16 %v922, %v918
    %v1175 = vpack.c.b16 %v923, %v919
    %v1176 = vpack.c.b16 %v924, %v920
    %v1177 = vpack.c.b16 %v929, %v925
    %v1178 = vpack.c.b16 %v930, %v926
    %v1179 = vpack.c.b16 %v931, %v927
    %v1180 = vpack.c.b16 %v932, %v928
    %v1181 = vpack.c.b16 %v937, %v933
    %v1182 = vpack.c.b16 %v938, %v934
    %v1183 = vpack.c.b16 %v939, %v935
    %v1184 = vpack.c.b16 %v940, %v936
    %v1185 = vpack.c.b16 %v945, %v941
    %v1186 = vpack.c.b16 %v946, %v942
    %v1187 = vpack.c.b16 %v947, %v943
    %v1188 = vpack.c.b16 %v948, %v944
    %v1189 = vpack.c.b16 %v953, %v949
    %v1190 = vpack.c.b16 %v954, %v950
    %v1191 = vpack.c.b16 %v955, %v951
    %v1192 = vpack.c.b16 %v956, %v952
    %v1193 = vpack.c.b16 %v961, %v957
    %v1194 = vpack.c.b16 %v962, %v958
    %v1195 = vpack.c.b16 %v963, %v959
    %v1196 = vpack.c.b16 %v964, %v960
    %v1197 = vpack.c.b16 %v969, %v965
    %v1198 = vpack.c.b16 %v970, %v966
    %v1199 = vpack.c.b16 %v971, %v967
    %v1200 = vpack.c.b16 %v972, %v968
    %v1201 = vpack.c.b16 %v977, %v973
    %v1202 = vpack.c.b16 %v978, %v974
    %v1203 = vpack.c.b16 %v979, %v975
    %v1204 = vpack.c.b16 %v980, %v976
    %1429 = vmatprep.subr.bf16.mxu0 %v982
    %1430 = vmatpush1.bf16.msra.mxu0 %v981
    %1431 = vmatprep.subr.bf16.mxu0 %v986
    %1432 = vmatpush1.bf16.msra.mxu0 %v985
    %1433 = vmatprep.subr.bf16.mxu0 %v990
    %1434 = vmatpush1.bf16.msra.mxu0 %v989
    %1435 = vmatprep.subr.bf16.mxu0 %v994
    %1436 = vmatpush1.bf16.msra.mxu0 %v993
    %1437 = vmatprep.subr.bf16.mxu0 %v998
    %1438 = vmatpush1.bf16.msra.mxu0 %v997
    %1439 = vmatprep.subr.bf16.mxu0 %v1002
    %1440 = vmatpush1.bf16.msra.mxu0 %v1001
    %1441 = vmatprep.subr.bf16.mxu0 %v1006
    %1442 = vmatpush1.bf16.msra.mxu0 %v1005
    %1443 = vmatprep.subr.bf16.mxu0 %v1010
    %1444 = vmatpush1.bf16.msra.mxu0 %v1009
    %1445 = vmatprep.subr.bf16.mxu0 %v1014
    %1446 = vmatpush1.bf16.msra.mxu0 %v1013
    %1447 = vmatprep.subr.bf16.mxu0 %v1018
    %1448 = vmatpush1.bf16.msra.mxu0 %v1017
    %1449 = vmatprep.subr.bf16.mxu0 %v1022
    %1450 = vmatpush1.bf16.msra.mxu0 %v1021
    %1451 = vmatprep.subr.bf16.mxu0 %v1026
    %1452 = vmatpush1.bf16.msra.mxu0 %v1025
    %1453 = vmatprep.subr.bf16.mxu0 %v1030
    %1454 = vmatpush1.bf16.msra.mxu0 %v1029
    %1455 = vmatprep.subr.bf16.mxu0 %v1034
    %1456 = vmatpush1.bf16.msra.mxu0 %v1033
    %1457 = vmatprep.subr.bf16.mxu0 %v1038
    %1458 = vmatpush1.bf16.msra.mxu0 %v1037
    %1459 = vmatprep.subr.bf16.mxu0 %v1042
    %1460 = vmatpush1.bf16.msra.mxu0 %v1041
    %1461 = vmatprep.mubr.bf16.mxu0 %v296
    %1462 = vmatmul.mubr.bf16.gmra.mrb[0].mxu0 %v295
    %v1463 = vpop.f32.mrb[0].mxu0
    %v1464 = vadd.f32 %v267, %v1463
    %v1465 = vpop.f32.mrb[0].mxu0
    %v1466 = vadd.f32 %v271, %v1465
    %v1467 = vpop.f32.mrb[0].mxu0
    %v1468 = vpop.f32.mrb[0].mxu0
    %1469 = vdwg.mxu0
    %1470 = vmatprep.subr.bf16.mxu0 %v1046
    %1471 = vmatpush1.bf16.msra.mxu0 %v1045
    %1472 = vmatprep.subr.bf16.mxu0 %v1050
    %1473 = vmatpush1.bf16.msra.mxu0 %v1049
    %1474 = vmatprep.subr.bf16.mxu0 %v1054
    %1475 = vmatpush1.bf16.msra.mxu0 %v1053
    %1476 = vmatprep.subr.bf16.mxu0 %v1058
    %1477 = vmatpush1.bf16.msra.mxu0 %v1057
    %1478 = vmatprep.subr.bf16.mxu0 %v1062
    %1479 = vmatpush1.bf16.msra.mxu0 %v1061
    %1480 = vmatprep.subr.bf16.mxu0 %v1066
    %1481 = vmatpush1.bf16.msra.mxu0 %v1065
    %1482 = vmatprep.subr.bf16.mxu0 %v1070
    %1483 = vmatpush1.bf16.msra.mxu0 %v1069
    %1484 = vmatprep.subr.bf16.mxu0 %v1074
    %1485 = vmatpush1.bf16.msra.mxu0 %v1073
    %1486 = vmatprep.subr.bf16.mxu0 %v1078
    %1487 = vmatpush1.bf16.msra.mxu0 %v1077
    %1488 = vmatprep.subr.bf16.mxu0 %v1082
    %1489 = vmatpush1.bf16.msra.mxu0 %v1081
    %1490 = vmatprep.subr.bf16.mxu0 %v1086
    %1491 = vmatpush1.bf16.msra.mxu0 %v1085
    %1492 = vmatprep.subr.bf16.mxu0 %v1090
    %1493 = vmatpush1.bf16.msra.mxu0 %v1089
    %1494 = vmatprep.subr.bf16.mxu0 %v1094
    %1495 = vmatpush1.bf16.msra.mxu0 %v1093
    %1496 = vmatprep.subr.bf16.mxu0 %v1098
    %1497 = vmatpush1.bf16.msra.mxu0 %v1097
    %1498 = vmatprep.subr.bf16.mxu0 %v1102
    %1499 = vmatpush1.bf16.msra.mxu0 %v1101
    %1500 = vmatprep.subr.bf16.mxu0 %v1106
    %1501 = vmatpush1.bf16.msra.mxu0 %v1105
    %1502 = vmatprep.mubr.bf16.mxu0 %v298
    %1503 = vmatmul.mubr.bf16.gmra.mrb[0].mxu0 %v297
    %v1504 = vpop.f32.mrb[0].mxu0
    %v1505 = vadd.f32 %v1464, %v1504
    %v1506 = vpop.f32.mrb[0].mxu0
    %v1507 = vadd.f32 %v1466, %v1506
    %v1508 = vpop.f32.mrb[0].mxu0
    %v1509 = vpop.f32.mrb[0].mxu0
    %1510 = vdwg.mxu0
    %1511 = vmatprep.subr.bf16.mxu0 %v1110
    %1512 = vmatpush1.bf16.msra.mxu0 %v1109
    %1513 = vmatprep.subr.bf16.mxu0 %v1114
    %1514 = vmatpush1.bf16.msra.mxu0 %v1113
    %1515 = vmatprep.subr.bf16.mxu0 %v1118
    %1516 = vmatpush1.bf16.msra.mxu0 %v1117
    %1517 = vmatprep.subr.bf16.mxu0 %v1122
    %1518 = vmatpush1.bf16.msra.mxu0 %v1121
    %1519 = vmatprep.subr.bf16.mxu0 %v1126
    %1520 = vmatpush1.bf16.msra.mxu0 %v1125
    %1521 = vmatprep.subr.bf16.mxu0 %v1130
    %1522 = vmatpush1.bf16.msra.mxu0 %v1129
    %1523 = vmatprep.subr.bf16.mxu0 %v1134
    %1524 = vmatpush1.bf16.msra.mxu0 %v1133
    %1525 = vmatprep.subr.bf16.mxu0 %v1138
    %1526 = vmatpush1.bf16.msra.mxu0 %v1137
    %1527 = vmatprep.subr.bf16.mxu0 %v1142
    %1528 = vmatpush1.bf16.msra.mxu0 %v1141
    %1529 = vmatprep.subr.bf16.mxu0 %v1146
    %1530 = vmatpush1.bf16.msra.mxu0 %v1145
    %1531 = vmatprep.subr.bf16.mxu0 %v1150
    %1532 = vmatpush1.bf16.msra.mxu0 %v1149
    %1533 = vmatprep.subr.bf16.mxu0 %v1154
    %1534 = vmatpush1.bf16.msra.mxu0 %v1153
    %1535 = vmatprep.subr.bf16.mxu0 %v1158
    %1536 = vmatpush1.bf16.msra.mxu0 %v1157
    %1537 = vmatprep.subr.bf16.mxu0 %v1162
    %1538 = vmatpush1.bf16.msra.mxu0 %v1161
    %1539 = vmatprep.subr.bf16.mxu0 %v1166
    %1540 = vmatpush1.bf16.msra.mxu0 %v1165
    %1541 = vmatprep.subr.bf16.mxu0 %v1170
    %1542 = vmatpush1.bf16.msra.mxu0 %v1169
    %1543 = vmatprep.mubr.bf16.mxu0 %v300
    %1544 = vmatmul.mubr.bf16.gmra.mrb[0].mxu0 %v299
    %v1545 = vpop.f32.mrb[0].mxu0
    %v1546 = vadd.f32 %v1505, %v1545
    %v1547 = vpop.f32.mrb[0].mxu0
    %v1548 = vadd.f32 %v1507, %v1547
    %v1549 = vpop.f32.mrb[0].mxu0
    %v1550 = vpop.f32.mrb[0].mxu0
    %1551 = vdwg.mxu0
    %1552 = vmatprep.subr.bf16.mxu0 %v1174
    %1553 = vmatpush1.bf16.msra.mxu0 %v1173
    %1554 = vmatprep.subr.bf16.mxu0 %v1178
    %1555 = vmatpush1.bf16.msra.mxu0 %v1177
    %1556 = vmatprep.subr.bf16.mxu0 %v1182
    %1557 = vmatpush1.bf16.msra.mxu0 %v1181
    %1558 = vmatprep.subr.bf16.mxu0 %v1186
    %1559 = vmatpush1.bf16.msra.mxu0 %v1185
    %1560 = vmatprep.subr.bf16.mxu0 %v1190
    %1561 = vmatpush1.bf16.msra.mxu0 %v1189
    %1562 = vmatprep.subr.bf16.mxu0 %v1194
    %1563 = vmatpush1.bf16.msra.mxu0 %v1193
    %1564 = vmatprep.subr.bf16.mxu0 %v1198
    %1565 = vmatpush1.bf16.msra.mxu0 %v1197
    %1566 = vmatprep.subr.bf16.mxu0 %v1202
    %1567 = vmatpush1.bf16.msra.mxu0 %v1201
    %1568 = vmatprep.subr.bf16.mxu0 0
    %1569 = vmatpush1.bf16.msra.mxu0 0
    %1570 = vmatprep.subr.bf16.mxu0 0
    %1571 = vmatpush1.bf16.msra.mxu0 0
    %1572 = vmatprep.subr.bf16.mxu0 0
    %1573 = vmatpush1.bf16.msra.mxu0 0
    %1574 = vmatprep.subr.bf16.mxu0 0
    %1575 = vmatpush1.bf16.msra.mxu0 0
    %1576 = vmatprep.subr.bf16.mxu0 0
    %1577 = vmatpush1.bf16.msra.mxu0 0
    %1578 = vmatprep.subr.bf16.mxu0 0
    %1579 = vmatpush1.bf16.msra.mxu0 0
    %1580 = vmatprep.subr.bf16.mxu0 0
    %1581 = vmatpush1.bf16.msra.mxu0 0
    %1582 = vmatprep.subr.bf16.mxu0 0
    %1583 = vmatpush1.bf16.msra.mxu0 0
    %1584 = vmatprep.mubr.bf16.mxu0 0
    %1585 = vmatmul.mubr.bf16.gmra.mrb[0].mxu0 %v301
    %v1586 = vpop.f32.mrb[0].mxu0
    %v1587 = vadd.f32 %v1546, %v1586
    %v1588 = vpop.f32.mrb[0].mxu0
    %v1589 = vadd.f32 %v1548, %v1588
    %v1590 = vpop.f32.mrb[0].mxu0
    %v1591 = vpop.f32.mrb[0].mxu0
    %1592 = vdwg.mxu0
    %1593 = vmatprep.subr.bf16.mxu0 %v984
    %1594 = vmatpush1.bf16.msra.mxu0 %v983
    %1595 = vmatprep.subr.bf16.mxu0 %v988
    %1596 = vmatpush1.bf16.msra.mxu0 %v987
    %1597 = vmatprep.subr.bf16.mxu0 %v992
    %1598 = vmatpush1.bf16.msra.mxu0 %v991
    %1599 = vmatprep.subr.bf16.mxu0 %v996
    %1600 = vmatpush1.bf16.msra.mxu0 %v995
    %1601 = vmatprep.subr.bf16.mxu0 %v1000
    %1602 = vmatpush1.bf16.msra.mxu0 %v999
    %1603 = vmatprep.subr.bf16.mxu0 %v1004
    %1604 = vmatpush1.bf16.msra.mxu0 %v1003
    %1605 = vmatprep.subr.bf16.mxu0 %v1008
    %1606 = vmatpush1.bf16.msra.mxu0 %v1007
    %1607 = vmatprep.subr.bf16.mxu0 %v1012
    %1608 = vmatpush1.bf16.msra.mxu0 %v1011
    %1609 = vmatprep.subr.bf16.mxu0 %v1016
    %1610 = vmatpush1.bf16.msra.mxu0 %v1015
    %1611 = vmatprep.subr.bf16.mxu0 %v1020
    %1612 = vmatpush1.bf16.msra.mxu0 %v1019
    %1613 = vmatprep.subr.bf16.mxu0 %v1024
    %1614 = vmatpush1.bf16.msra.mxu0 %v1023
    %1615 = vmatprep.subr.bf16.mxu0 %v1028
    %1616 = vmatpush1.bf16.msra.mxu0 %v1027
    %1617 = vmatprep.subr.bf16.mxu0 %v1032
    %1618 = vmatpush1.bf16.msra.mxu0 %v1031
    %1619 = vmatprep.subr.bf16.mxu0 %v1036
    %1620 = vmatpush1.bf16.msra.mxu0 %v1035
    %1621 = vmatprep.subr.bf16.mxu0 %v1040
    %1622 = vmatpush1.bf16.msra.mxu0 %v1039
    %1623 = vmatprep.subr.bf16.mxu0 %v1044
    %1624 = vmatpush1.bf16.msra.mxu0 %v1043
    %1625 = vmatprep.mubr.bf16.mxu0 %v296
    %1626 = vmatmul.mubr.bf16.gmra.mrb[0].mxu0 %v295
    %v1627 = vpop.f32.mrb[0].mxu0
    %v1628 = vadd.f32 %v275, %v1627
    %v1629 = vpop.f32.mrb[0].mxu0
    %v1630 = vadd.f32 %v279, %v1629
    %v1631 = vpop.f32.mrb[0].mxu0
    %v1632 = vpop.f32.mrb[0].mxu0
    %1633 = vdwg.mxu0
    %1634 = vmatprep.subr.bf16.mxu0 %v1048
    %1635 = vmatpush1.bf16.msra.mxu0 %v1047
    %1636 = vmatprep.subr.bf16.mxu0 %v1052
    %1637 = vmatpush1.bf16.msra.mxu0 %v1051
    %1638 = vmatprep.subr.bf16.mxu0 %v1056
    %1639 = vmatpush1.bf16.msra.mxu0 %v1055
    %1640 = vmatprep.subr.bf16.mxu0 %v1060
    %1641 = vmatpush1.bf16.msra.mxu0 %v1059
    %1642 = vmatprep.subr.bf16.mxu0 %v1064
    %1643 = vmatpush1.bf16.msra.mxu0 %v1063
    %1644 = vmatprep.subr.bf16.mxu0 %v1068
    %1645 = vmatpush1.bf16.msra.mxu0 %v1067
    %1646 = vmatprep.subr.bf16.mxu0 %v1072
    %1647 = vmatpush1.bf16.msra.mxu0 %v1071
    %1648 = vmatprep.subr.bf16.mxu0 %v1076
    %1649 = vmatpush1.bf16.msra.mxu0 %v1075
    %1650 = vmatprep.subr.bf16.mxu0 %v1080
    %1651 = vmatpush1.bf16.msra.mxu0 %v1079
    %1652 = vmatprep.subr.bf16.mxu0 %v1084
    %1653 = vmatpush1.bf16.msra.mxu0 %v1083
    %1654 = vmatprep.subr.bf16.mxu0 %v1088
    %1655 = vmatpush1.bf16.msra.mxu0 %v1087
    %1656 = vmatprep.subr.bf16.mxu0 %v1092
    %1657 = vmatpush1.bf16.msra.mxu0 %v1091
    %1658 = vmatprep.subr.bf16.mxu0 %v1096
    %1659 = vmatpush1.bf16.msra.mxu0 %v1095
    %1660 = vmatprep.subr.bf16.mxu0 %v1100
    %1661 = vmatpush1.bf16.msra.mxu0 %v1099
    %1662 = vmatprep.subr.bf16.mxu0 %v1104
    %1663 = vmatpush1.bf16.msra.mxu0 %v1103
    %1664 = vmatprep.subr.bf16.mxu0 %v1108
    %1665 = vmatpush1.bf16.msra.mxu0 %v1107
    %1666 = vmatprep.mubr.bf16.mxu0 %v298
    %1667 = vmatmul.mubr.bf16.gmra.mrb[0].mxu0 %v297
    %v1668 = vpop.f32.mrb[0].mxu0
    %v1669 = vadd.f32 %v1628, %v1668
    %v1670 = vpop.f32.mrb[0].mxu0
    %v1671 = vadd.f32 %v1630, %v1670
    %v1672 = vpop.f32.mrb[0].mxu0
    %v1673 = vpop.f32.mrb[0].mxu0
    %1674 = vdwg.mxu0
    %1675 = vmatprep.subr.bf16.mxu0 %v1112
    %1676 = vmatpush1.bf16.msra.mxu0 %v1111
    %1677 = vmatprep.subr.bf16.mxu0 %v1116
    %1678 = vmatpush1.bf16.msra.mxu0 %v1115
    %1679 = vmatprep.subr.bf16.mxu0 %v1120
    %1680 = vmatpush1.bf16.msra.mxu0 %v1119
    %1681 = vmatprep.subr.bf16.mxu0 %v1124
    %1682 = vmatpush1.bf16.msra.mxu0 %v1123
    %1683 = vmatprep.subr.bf16.mxu0 %v1128
    %1684 = vmatpush1.bf16.msra.mxu0 %v1127
    %1685 = vmatprep.subr.bf16.mxu0 %v1132
    %1686 = vmatpush1.bf16.msra.mxu0 %v1131
    %1687 = vmatprep.subr.bf16.mxu0 %v1136
    %1688 = vmatpush1.bf16.msra.mxu0 %v1135
    %1689 = vmatprep.subr.bf16.mxu0 %v1140
    %1690 = vmatpush1.bf16.msra.mxu0 %v1139
    %1691 = vmatprep.subr.bf16.mxu0 %v1144
    %1692 = vmatpush1.bf16.msra.mxu0 %v1143
    %1693 = vmatprep.subr.bf16.mxu0 %v1148
    %1694 = vmatpush1.bf16.msra.mxu0 %v1147
    %1695 = vmatprep.subr.bf16.mxu0 %v1152
    %1696 = vmatpush1.bf16.msra.mxu0 %v1151
    %1697 = vmatprep.subr.bf16.mxu0 %v1156
    %1698 = vmatpush1.bf16.msra.mxu0 %v1155
    %1699 = vmatprep.subr.bf16.mxu0 %v1160
    %1700 = vmatpush1.bf16.msra.mxu0 %v1159
    %1701 = vmatprep.subr.bf16.mxu0 %v1164
    %1702 = vmatpush1.bf16.msra.mxu0 %v1163
    %1703 = vmatprep.subr.bf16.mxu0 %v1168
    %1704 = vmatpush1.bf16.msra.mxu0 %v1167
    %1705 = vmatprep.subr.bf16.mxu0 %v1172
    %1706 = vmatpush1.bf16.msra.mxu0 %v1171
    %1707 = vmatprep.mubr.bf16.mxu0 %v300
    %1708 = vmatmul.mubr.bf16.gmra.mrb[0].mxu0 %v299
    %v1709 = vpop.f32.mrb[0].mxu0
    %v1710 = vadd.f32 %v1669, %v1709
    %v1711 = vpop.f32.mrb[0].mxu0
    %v1712 = vadd.f32 %v1671, %v1711
    %v1713 = vpop.f32.mrb[0].mxu0
    %v1714 = vpop.f32.mrb[0].mxu0
    %1715 = vdwg.mxu0
    %1716 = vmatprep.subr.bf16.mxu0 %v1176
    %1717 = vmatpush1.bf16.msra.mxu0 %v1175
    %1718 = vmatprep.subr.bf16.mxu0 %v1180
    %1719 = vmatpush1.bf16.msra.mxu0 %v1179
    %1720 = vmatprep.subr.bf16.mxu0 %v1184
    %1721 = vmatpush1.bf16.msra.mxu0 %v1183
    %1722 = vmatprep.subr.bf16.mxu0 %v1188
    %1723 = vmatpush1.bf16.msra.mxu0 %v1187
    %1724 = vmatprep.subr.bf16.mxu0 %v1192
    %1725 = vmatpush1.bf16.msra.mxu0 %v1191
    %1726 = vmatprep.subr.bf16.mxu0 %v1196
    %1727 = vmatpush1.bf16.msra.mxu0 %v1195
    %1728 = vmatprep.subr.bf16.mxu0 %v1200
    %1729 = vmatpush1.bf16.msra.mxu0 %v1199
    %1730 = vmatprep.subr.bf16.mxu0 %v1204
    %1731 = vmatpush1.bf16.msra.mxu0 %v1203
    %1732 = vmatprep.subr.bf16.mxu0 0
    %1733 = vmatpush1.bf16.msra.mxu0 0
    %1734 = vmatprep.subr.bf16.mxu0 0
    %1735 = vmatpush1.bf16.msra.mxu0 0
    %1736 = vmatprep.subr.bf16.mxu0 0
    %1737 = vmatpush1.bf16.msra.mxu0 0
    %1738 = vmatprep.subr.bf16.mxu0 0
    %1739 = vmatpush1.bf16.msra.mxu0 0
    %1740 = vmatprep.subr.bf16.mxu0 0
    %1741 = vmatpush1.bf16.msra.mxu0 0
    %1742 = vmatprep.subr.bf16.mxu0 0
    %1743 = vmatpush1.bf16.msra.mxu0 0
    %1744 = vmatprep.subr.bf16.mxu0 0
    %1745 = vmatpush1.bf16.msra.mxu0 0
    %1746 = vmatprep.subr.bf16.mxu0 0
    %1747 = vmatpush1.bf16.msra.mxu0 0
    %1748 = vmatprep.mubr.bf16.mxu0 0
    %1749 = vmatmul.mubr.bf16.gmra.mrb[0].mxu0 %v301
    %v1750 = vpop.f32.mrb[0].mxu0
    %v1751 = vadd.f32 %v1710, %v1750
    %v1752 = vpop.f32.mrb[0].mxu0
    %v1753 = vadd.f32 %v1712, %v1752
    %v1754 = vpop.f32.mrb[0].mxu0
    %v1755 = vpop.f32.mrb[0].mxu0
    %1756 = vdwg.mxu0
    %v1757 = vmax.f32 %v1587, 0.0
    %v1758 = vmax.f32 %v1589, 0.0
    %v1759 = vmax.f32 %v1751, 0.0
    %v1760 = vmax.f32 %v1753, 0.0
    %v1761 = vpack.c.bf16 %v1757, %v1757
    %v1762 = vpack.c.bf16 %v1758, %v1758
    %v1763 = vpack.c.bf16 %v1759, %v1759
    %v1764 = vpack.c.bf16 %v1760, %v1760
    %v1765 = vld [vmem:[%s3] sm:$0xff]
    %v1766 = vld [vmem:[%s3 + $0x8] sm:$0xff]
    %v1767 = vld [vmem:[%s3 + $0x10] sm:$0xff]
    %v1768 = vld [vmem:[%s3 + $0x18] sm:$0xff]
    %v1769 = vld [vmem:[%s3 + $0x20] sm:$0xff]
    %v1770 = vld [vmem:[%s3 + $0x28] sm:$0xff]
    %v1771 = vld [vmem:[%s3 + $0x30] sm:$0xff]
    %v1772 = vld [vmem:[%s3 + $0x38] sm:$0xff]
    %v1773 = vld [vmem:[%s3 + $0x40] sm:$0xff]
    %v1774 = vld [vmem:[%s3 + $0x48] sm:$0xff]
    %v1775 = vld [vmem:[%s3 + $0x50] sm:$0xff]
    %v1776 = vld [vmem:[%s3 + $0x58] sm:$0xff]
    %v1777 = vld [vmem:[%s3 + $0x60] sm:$0xff]
    %v1778 = vld [vmem:[%s3 + $0x68] sm:$0xff]
    %v1779 = vld [vmem:[%s3 + $0x70] sm:$0xff]
    %v1780 = vld [vmem:[%s3 + $0x78] sm:$0xff]
    %v1781 = vld [vmem:[%s3 + $0x80] sm:$0xff]
    %v1782 = vld [vmem:[%s3 + $0x88] sm:$0xff]
    %v1783 = vld [vmem:[%s3 + $0x90] sm:$0xff]
    %v1784 = vld [vmem:[%s3 + $0x98] sm:$0xff]
    %v1785 = vld [vmem:[%s3 + $0xa0] sm:$0xff]
    %v1786 = vld [vmem:[%s3 + $0xa8] sm:$0xff]
    %v1787 = vld [vmem:[%s3 + $0xb0] sm:$0xff]
    %v1788 = vld [vmem:[%s3 + $0xb8] sm:$0xff]
    %v1789 = vld [vmem:[%s3 + $0xc0] sm:$0xff]
    %v1790 = vld [vmem:[%s3 + $0xc8] sm:$0xff]
    %v1791 = vld [vmem:[%s3 + $0xd0] sm:$0xff]
    %v1792 = vld [vmem:[%s3 + $0xd8] sm:$0xff]
    %v1793 = vld [vmem:[%s3 + $0xe0] sm:$0xff]
    %v1794 = vld [vmem:[%s3 + $0xe8] sm:$0xff]
    %v1795 = vld [vmem:[%s3 + $0xf0] sm:$0xff]
    %v1796 = vld [vmem:[%s3 + $0xf8] sm:$0xff]
    %v1797 = vld [vmem:[%s3 + $0x100] sm:$0xff]
    %v1798 = vld [vmem:[%s3 + $0x108] sm:$0xff]
    %v1799 = vld [vmem:[%s3 + $0x110] sm:$0xff]
    %v1800 = vld [vmem:[%s3 + $0x118] sm:$0xff]
    %v1801 = vld [vmem:[%s3 + $0x120] sm:$0xff]
    %v1802 = vld [vmem:[%s3 + $0x128] sm:$0xff]
    %v1803 = vld [vmem:[%s3 + $0x130] sm:$0xff]
    %v1804 = vld [vmem:[%s3 + $0x138] sm:$0xff]
    %v1805 = vld [vmem:[%s3 + $0x140] sm:$0xff]
    %v1806 = vld [vmem:[%s3 + $0x148] sm:$0xff]
    %v1807 = vld [vmem:[%s3 + $0x150] sm:$0xff]
    %v1808 = vld [vmem:[%s3 + $0x158] sm:$0xff]
    %v1809 = vld [vmem:[%s3 + $0x160] sm:$0xff]
    %v1810 = vld [vmem:[%s3 + $0x168] sm:$0xff]
    %v1811 = vld [vmem:[%s3 + $0x170] sm:$0xff]
    %v1812 = vld [vmem:[%s3 + $0x178] sm:$0xff]
    %v1813 = vld [vmem:[%s3 + $0x180] sm:$0xff]
    %v1814 = vld [vmem:[%s3 + $0x188] sm:$0xff]
    %v1815 = vld [vmem:[%s3 + $0x190] sm:$0xff]
    %v1816 = vld [vmem:[%s3 + $0x198] sm:$0xff]
    %v1817 = vld [vmem:[%s3 + $0x1a0] sm:$0xff]
    %v1818 = vld [vmem:[%s3 + $0x1a8] sm:$0xff]
    %v1819 = vld [vmem:[%s3 + $0x1b0] sm:$0xff]
    %v1820 = vld [vmem:[%s3 + $0x1b8] sm:$0xff]
    %v1821 = vld [vmem:[%s3 + $0x1c0] sm:$0xff]
    %v1822 = vld [vmem:[%s3 + $0x1c8] sm:$0xff]
    %v1823 = vld [vmem:[%s3 + $0x1d0] sm:$0xff]
    %v1824 = vld [vmem:[%s3 + $0x1d8] sm:$0xff]
    %v1825 = vld [vmem:[%s3 + $0x1e0] sm:$0xff]
    %v1826 = vld [vmem:[%s3 + $0x1e8] sm:$0xff]
    %v1827 = vld [vmem:[%s3 + $0x1f0] sm:$0xff]
    %v1828 = vld [vmem:[%s3 + $0x1f8] sm:$0xff]
    %v1829 = vld [vmem:[%s4] sm:$0x3]
    %v1831 = vlaneseq
    %v1832 = vshrl.u32 %v1831, 7
    %v1833 = vsub.s32 0, %v1832
    %v1834 = vrot.slane %v1829, %v1833
    %v1835 = vlaneseq
    %v1836 = vshrl.u32 %v1835, 7
    %v1837 = vsub.s32 1, %v1836
    %v1838 = vrot.slane %v1829, %v1837
    %v1905 = vunpack.c.l.b16 %v1765
    %v1906 = vunpack.c.h.b16 %v1765
    %v1907 = vunpack.c.l.b16 %v1766
    %v1908 = vunpack.c.h.b16 %v1766
    %v1909 = vunpack.c.l.b16 %v1767
    %v1910 = vunpack.c.h.b16 %v1767
    %v1911 = vunpack.c.l.b16 %v1768
    %v1912 = vunpack.c.h.b16 %v1768
    %v1913 = vunpack.c.l.b16 %v1769
    %v1914 = vunpack.c.h.b16 %v1769
    %v1915 = vunpack.c.l.b16 %v1770
    %v1916 = vunpack.c.h.b16 %v1770
    %v1917 = vunpack.c.l.b16 %v1771
    %v1918 = vunpack.c.h.b16 %v1771
    %v1919 = vunpack.c.l.b16 %v1772
    %v1920 = vunpack.c.h.b16 %v1772
    %v1921 = vunpack.c.l.b16 %v1773
    %v1922 = vunpack.c.h.b16 %v1773
    %v1923 = vunpack.c.l.b16 %v1774
    %v1924 = vunpack.c.h.b16 %v1774
    %v1925 = vunpack.c.l.b16 %v1775
    %v1926 = vunpack.c.h.b16 %v1775
    %v1927 = vunpack.c.l.b16 %v1776
    %v1928 = vunpack.c.h.b16 %v1776
    %v1929 = vunpack.c.l.b16 %v1777
    %v1930 = vunpack.c.h.b16 %v1777
    %v1931 = vunpack.c.l.b16 %v1778
    %v1932 = vunpack.c.h.b16 %v1778
    %v1933 = vunpack.c.l.b16 %v1779
    %v1934 = vunpack.c.h.b16 %v1779
    %v1935 = vunpack.c.l.b16 %v1780
    %v1936 = vunpack.c.h.b16 %v1780
    %v1937 = vunpack.c.l.b16 %v1781
    %v1938 = vunpack.c.h.b16 %v1781
    %v1939 = vunpack.c.l.b16 %v1782
    %v1940 = vunpack.c.h.b16 %v1782
    %v1941 = vunpack.c.l.b16 %v1783
    %v1942 = vunpack.c.h.b16 %v1783
    %v1943 = vunpack.c.l.b16 %v1784
    %v1944 = vunpack.c.h.b16 %v1784
    %v1945 = vunpack.c.l.b16 %v1785
    %v1946 = vunpack.c.h.b16 %v1785
    %v1947 = vunpack.c.l.b16 %v1786
    %v1948 = vunpack.c.h.b16 %v1786
    %v1949 = vunpack.c.l.b16 %v1787
    %v1950 = vunpack.c.h.b16 %v1787
    %v1951 = vunpack.c.l.b16 %v1788
    %v1952 = vunpack.c.h.b16 %v1788
    %v1953 = vunpack.c.l.b16 %v1789
    %v1954 = vunpack.c.h.b16 %v1789
    %v1955 = vunpack.c.l.b16 %v1790
    %v1956 = vunpack.c.h.b16 %v1790
    %v1957 = vunpack.c.l.b16 %v1791
    %v1958 = vunpack.c.h.b16 %v1791
    %v1959 = vunpack.c.l.b16 %v1792
    %v1960 = vunpack.c.h.b16 %v1792
    %v1961 = vunpack.c.l.b16 %v1793
    %v1962 = vunpack.c.h.b16 %v1793
    %v1963 = vunpack.c.l.b16 %v1794
    %v1964 = vunpack.c.h.b16 %v1794
    %v1965 = vunpack.c.l.b16 %v1795
    %v1966 = vunpack.c.h.b16 %v1795
    %v1967 = vunpack.c.l.b16 %v1796
    %v1968 = vunpack.c.h.b16 %v1796
    %v1969 = vunpack.c.l.b16 %v1797
    %v1970 = vunpack.c.h.b16 %v1797
    %v1971 = vunpack.c.l.b16 %v1798
    %v1972 = vunpack.c.h.b16 %v1798
    %v1973 = vunpack.c.l.b16 %v1799
    %v1974 = vunpack.c.h.b16 %v1799
    %v1975 = vunpack.c.l.b16 %v1800
    %v1976 = vunpack.c.h.b16 %v1800
    %v1977 = vunpack.c.l.b16 %v1801
    %v1978 = vunpack.c.h.b16 %v1801
    %v1979 = vunpack.c.l.b16 %v1802
    %v1980 = vunpack.c.h.b16 %v1802
    %v1981 = vunpack.c.l.b16 %v1803
    %v1982 = vunpack.c.h.b16 %v1803
    %v1983 = vunpack.c.l.b16 %v1804
    %v1984 = vunpack.c.h.b16 %v1804
    %v1985 = vunpack.c.l.b16 %v1805
    %v1986 = vunpack.c.h.b16 %v1805
    %v1987 = vunpack.c.l.b16 %v1806
    %v1988 = vunpack.c.h.b16 %v1806
    %v1989 = vunpack.c.l.b16 %v1807
    %v1990 = vunpack.c.h.b16 %v1807
    %v1991 = vunpack.c.l.b16 %v1808
    %v1992 = vunpack.c.h.b16 %v1808
    %v1993 = vunpack.c.l.b16 %v1809
    %v1994 = vunpack.c.h.b16 %v1809
    %v1995 = vunpack.c.l.b16 %v1810
    %v1996 = vunpack.c.h.b16 %v1810
    %v1997 = vunpack.c.l.b16 %v1811
    %v1998 = vunpack.c.h.b16 %v1811
    %v1999 = vunpack.c.l.b16 %v1812
    %v2000 = vunpack.c.h.b16 %v1812
    %v2001 = vunpack.c.l.b16 %v1813
    %v2002 = vunpack.c.h.b16 %v1813
    %v2003 = vunpack.c.l.b16 %v1814
    %v2004 = vunpack.c.h.b16 %v1814
    %v2005 = vunpack.c.l.b16 %v1815
    %v2006 = vunpack.c.h.b16 %v1815
    %v2007 = vunpack.c.l.b16 %v1816
    %v2008 = vunpack.c.h.b16 %v1816
    %v2009 = vunpack.c.l.b16 %v1817
    %v2010 = vunpack.c.h.b16 %v1817
    %v2011 = vunpack.c.l.b16 %v1818
    %v2012 = vunpack.c.h.b16 %v1818
    %v2013 = vunpack.c.l.b16 %v1819
    %v2014 = vunpack.c.h.b16 %v1819
    %v2015 = vunpack.c.l.b16 %v1820
    %v2016 = vunpack.c.h.b16 %v1820
    %v2017 = vunpack.c.l.b16 %v1821
    %v2018 = vunpack.c.h.b16 %v1821
    %v2019 = vunpack.c.l.b16 %v1822
    %v2020 = vunpack.c.h.b16 %v1822
    %v2021 = vunpack.c.l.b16 %v1823
    %v2022 = vunpack.c.h.b16 %v1823
    %v2023 = vunpack.c.l.b16 %v1824
    %v2024 = vunpack.c.h.b16 %v1824
    %v2025 = vunpack.c.l.b16 %v1825
    %v2026 = vunpack.c.h.b16 %v1825
    %v2027 = vunpack.c.l.b16 %v1826
    %v2028 = vunpack.c.h.b16 %v1826
    %v2029 = vunpack.c.l.b16 %v1827
    %v2030 = vunpack.c.h.b16 %v1827
    %v2031 = vunpack.c.l.b16 %v1828
    %v2032 = vunpack.c.h.b16 %v1828
    %v2033 = vpack.c.b16 %v1907, %v1905
    %v2034 = vpack.c.b16 %v1908, %v1906
    %v2035 = vpack.c.b16 %v1911, %v1909
    %v2036 = vpack.c.b16 %v1912, %v1910
    %v2037 = vpack.c.b16 %v1915, %v1913
    %v2038 = vpack.c.b16 %v1916, %v1914
    %v2039 = vpack.c.b16 %v1919, %v1917
    %v2040 = vpack.c.b16 %v1920, %v1918
    %v2041 = vpack.c.b16 %v1923, %v1921
    %v2042 = vpack.c.b16 %v1924, %v1922
    %v2043 = vpack.c.b16 %v1927, %v1925
    %v2044 = vpack.c.b16 %v1928, %v1926
    %v2045 = vpack.c.b16 %v1931, %v1929
    %v2046 = vpack.c.b16 %v1932, %v1930
    %v2047 = vpack.c.b16 %v1935, %v1933
    %v2048 = vpack.c.b16 %v1936, %v1934
    %v2049 = vpack.c.b16 %v1939, %v1937
    %v2050 = vpack.c.b16 %v1940, %v1938
    %v2051 = vpack.c.b16 %v1943, %v1941
    %v2052 = vpack.c.b16 %v1944, %v1942
    %v2053 = vpack.c.b16 %v1947, %v1945
    %v2054 = vpack.c.b16 %v1948, %v1946
    %v2055 = vpack.c.b16 %v1951, %v1949
    %v2056 = vpack.c.b16 %v1952, %v1950
    %v2057 = vpack.c.b16 %v1955, %v1953
    %v2058 = vpack.c.b16 %v1956, %v1954
    %v2059 = vpack.c.b16 %v1959, %v1957
    %v2060 = vpack.c.b16 %v1960, %v1958
    %v2061 = vpack.c.b16 %v1963, %v1961
    %v2062 = vpack.c.b16 %v1964, %v1962
    %v2063 = vpack.c.b16 %v1967, %v1965
    %v2064 = vpack.c.b16 %v1968, %v1966
    %v2065 = vpack.c.b16 %v1971, %v1969
    %v2066 = vpack.c.b16 %v1972, %v1970
    %v2067 = vpack.c.b16 %v1975, %v1973
    %v2068 = vpack.c.b16 %v1976, %v1974
    %v2069 = vpack.c.b16 %v1979, %v1977
    %v2070 = vpack.c.b16 %v1980, %v1978
    %v2071 = vpack.c.b16 %v1983, %v1981
    %v2072 = vpack.c.b16 %v1984, %v1982
    %v2073 = vpack.c.b16 %v1987, %v1985
    %v2074 = vpack.c.b16 %v1988, %v1986
    %v2075 = vpack.c.b16 %v1991, %v1989
    %v2076 = vpack.c.b16 %v1992, %v1990
    %v2077 = vpack.c.b16 %v1995, %v1993
    %v2078 = vpack.c.b16 %v1996, %v1994
    %v2079 = vpack.c.b16 %v1999, %v1997
    %v2080 = vpack.c.b16 %v2000, %v1998
    %v2081 = vpack.c.b16 %v2003, %v2001
    %v2082 = vpack.c.b16 %v2004, %v2002
    %v2083 = vpack.c.b16 %v2007, %v2005
    %v2084 = vpack.c.b16 %v2008, %v2006
    %v2085 = vpack.c.b16 %v2011, %v2009
    %v2086 = vpack.c.b16 %v2012, %v2010
    %v2087 = vpack.c.b16 %v2015, %v2013
    %v2088 = vpack.c.b16 %v2016, %v2014
    %v2089 = vpack.c.b16 %v2019, %v2017
    %v2090 = vpack.c.b16 %v2020, %v2018
    %v2091 = vpack.c.b16 %v2023, %v2021
    %v2092 = vpack.c.b16 %v2024, %v2022
    %v2093 = vpack.c.b16 %v2027, %v2025
    %v2094 = vpack.c.b16 %v2028, %v2026
    %v2095 = vpack.c.b16 %v2031, %v2029
    %v2096 = vpack.c.b16 %v2032, %v2030
    %2161 = vmatprep.subr.bf16.mxu0 %v2034
    %2162 = vmatpush1.bf16.msra.mxu0 %v2033
    %2163 = vmatprep.subr.bf16.mxu0 %v2036
    %2164 = vmatpush1.bf16.msra.mxu0 %v2035
    %2165 = vmatprep.subr.bf16.mxu0 %v2038
    %2166 = vmatpush1.bf16.msra.mxu0 %v2037
    %2167 = vmatprep.subr.bf16.mxu0 %v2040
    %2168 = vmatpush1.bf16.msra.mxu0 %v2039
    %2169 = vmatprep.subr.bf16.mxu0 %v2042
    %2170 = vmatpush1.bf16.msra.mxu0 %v2041
    %2171 = vmatprep.subr.bf16.mxu0 %v2044
    %2172 = vmatpush1.bf16.msra.mxu0 %v2043
    %2173 = vmatprep.subr.bf16.mxu0 %v2046
    %2174 = vmatpush1.bf16.msra.mxu0 %v2045
    %2175 = vmatprep.subr.bf16.mxu0 %v2048
    %2176 = vmatpush1.bf16.msra.mxu0 %v2047
    %2177 = vmatprep.subr.bf16.mxu0 %v2050
    %2178 = vmatpush1.bf16.msra.mxu0 %v2049
    %2179 = vmatprep.subr.bf16.mxu0 %v2052
    %2180 = vmatpush1.bf16.msra.mxu0 %v2051
    %2181 = vmatprep.subr.bf16.mxu0 %v2054
    %2182 = vmatpush1.bf16.msra.mxu0 %v2053
    %2183 = vmatprep.subr.bf16.mxu0 %v2056
    %2184 = vmatpush1.bf16.msra.mxu0 %v2055
    %2185 = vmatprep.subr.bf16.mxu0 %v2058
    %2186 = vmatpush1.bf16.msra.mxu0 %v2057
    %2187 = vmatprep.subr.bf16.mxu0 %v2060
    %2188 = vmatpush1.bf16.msra.mxu0 %v2059
    %2189 = vmatprep.subr.bf16.mxu0 %v2062
    %2190 = vmatpush1.bf16.msra.mxu0 %v2061
    %2191 = vmatprep.subr.bf16.mxu0 %v2064
    %2192 = vmatpush1.bf16.msra.mxu0 %v2063
    %2193 = vmatprep.mubr.bf16.mxu0 %v1762
    %2194 = vmatmul.mubr.bf16.gmra.mrb[0].mxu0 %v1761
    %v2195 = vpop.f32.mrb[0].mxu0
    %v2196 = vadd.f32 %v1834, %v2195
    %v2197 = vpop.f32.mrb[0].mxu0
    %v2198 = vadd.f32 %v1838, %v2197
    %v2199 = vpop.f32.mrb[0].mxu0
    %v2200 = vpop.f32.mrb[0].mxu0
    %2201 = vdwg.mxu0
    %2202 = vmatprep.subr.bf16.mxu0 %v2066
    %2203 = vmatpush1.bf16.msra.mxu0 %v2065
    %2204 = vmatprep.subr.bf16.mxu0 %v2068
    %2205 = vmatpush1.bf16.msra.mxu0 %v2067
    %2206 = vmatprep.subr.bf16.mxu0 %v2070
    %2207 = vmatpush1.bf16.msra.mxu0 %v2069
    %2208 = vmatprep.subr.bf16.mxu0 %v2072
    %2209 = vmatpush1.bf16.msra.mxu0 %v2071
    %2210 = vmatprep.subr.bf16.mxu0 %v2074
    %2211 = vmatpush1.bf16.msra.mxu0 %v2073
    %2212 = vmatprep.subr.bf16.mxu0 %v2076
    %2213 = vmatpush1.bf16.msra.mxu0 %v2075
    %2214 = vmatprep.subr.bf16.mxu0 %v2078
    %2215 = vmatpush1.bf16.msra.mxu0 %v2077
    %2216 = vmatprep.subr.bf16.mxu0 %v2080
    %2217 = vmatpush1.bf16.msra.mxu0 %v2079
    %2218 = vmatprep.subr.bf16.mxu0 %v2082
    %2219 = vmatpush1.bf16.msra.mxu0 %v2081
    %2220 = vmatprep.subr.bf16.mxu0 %v2084
    %2221 = vmatpush1.bf16.msra.mxu0 %v2083
    %2222 = vmatprep.subr.bf16.mxu0 %v2086
    %2223 = vmatpush1.bf16.msra.mxu0 %v2085
    %2224 = vmatprep.subr.bf16.mxu0 %v2088
    %2225 = vmatpush1.bf16.msra.mxu0 %v2087
    %2226 = vmatprep.subr.bf16.mxu0 %v2090
    %2227 = vmatpush1.bf16.msra.mxu0 %v2089
    %2228 = vmatprep.subr.bf16.mxu0 %v2092
    %2229 = vmatpush1.bf16.msra.mxu0 %v2091
    %2230 = vmatprep.subr.bf16.mxu0 %v2094
    %2231 = vmatpush1.bf16.msra.mxu0 %v2093
    %2232 = vmatprep.subr.bf16.mxu0 %v2096
    %2233 = vmatpush1.bf16.msra.mxu0 %v2095
    %2234 = vmatprep.mubr.bf16.mxu0 %v1764
    %2235 = vmatmul.mubr.bf16.gmra.mrb[0].mxu0 %v1763
    %v2236 = vpop.f32.mrb[0].mxu0
    %v2237 = vadd.f32 %v2196, %v2236
    %v2238 = vpop.f32.mrb[0].mxu0
    %v2239 = vadd.f32 %v2198, %v2238
    %v2240 = vpop.f32.mrb[0].mxu0
    %v2241 = vpop.f32.mrb[0].mxu0
    %2242 = vdwg.mxu0
    %v2243 = vmax.f32 %v2237, 0.0
    %v2244 = vmax.f32 %v2239, 0.0
    %v2245 = vpack.c.bf16 %v2243, %v2243
    %v2246 = vpack.c.bf16 %v2244, %v2244
    %v2247 = vld [vmem:[%s5] sm:$0xf]
    %v2248 = vld [vmem:[%s5 + $0x4] sm:$0xf]
    %v2249 = vld [vmem:[%s5 + $0x8] sm:$0xf]
    %v2250 = vld [vmem:[%s5 + $0xc] sm:$0xf]
    %v2251 = vld [vmem:[%s5 + $0x10] sm:$0xf]
    %v2252 = vld [vmem:[%s5 + $0x14] sm:$0xf]
    %v2253 = vld [vmem:[%s5 + $0x18] sm:$0xf]
    %v2254 = vld [vmem:[%s5 + $0x1c] sm:$0xf]
    %v2255 = vld [vmem:[%s5 + $0x20] sm:$0xf]
    %v2256 = vld [vmem:[%s5 + $0x24] sm:$0xf]
    %v2257 = vld [vmem:[%s5 + $0x28] sm:$0xf]
    %v2258 = vld [vmem:[%s5 + $0x2c] sm:$0xf]
    %v2259 = vld [vmem:[%s5 + $0x30] sm:$0xf]
    %v2260 = vld [vmem:[%s5 + $0x34] sm:$0xf]
    %v2261 = vld [vmem:[%s5 + $0x38] sm:$0xf]
    %v2262 = vld [vmem:[%s5 + $0x3c] sm:$0xf]
    %v2263 = vld [vmem:[%s5 + $0x40] sm:$0xf]
    %v2264 = vld [vmem:[%s5 + $0x44] sm:$0xf]
    %v2265 = vld [vmem:[%s5 + $0x48] sm:$0xf]
    %v2266 = vld [vmem:[%s5 + $0x4c] sm:$0xf]
    %v2267 = vld [vmem:[%s5 + $0x50] sm:$0xf]
    %v2268 = vld [vmem:[%s5 + $0x54] sm:$0xf]
    %v2269 = vld [vmem:[%s5 + $0x58] sm:$0xf]
    %v2270 = vld [vmem:[%s5 + $0x5c] sm:$0xf]
    %v2271 = vld [vmem:[%s5 + $0x60] sm:$0xf]
    %v2272 = vld [vmem:[%s5 + $0x64] sm:$0xf]
    %v2273 = vld [vmem:[%s5 + $0x68] sm:$0xf]
    %v2274 = vld [vmem:[%s5 + $0x6c] sm:$0xf]
    %v2275 = vld [vmem:[%s5 + $0x70] sm:$0xf]
    %v2276 = vld [vmem:[%s5 + $0x74] sm:$0xf]
    %v2277 = vld [vmem:[%s5 + $0x78] sm:$0xf]
    %v2278 = vld [vmem:[%s5 + $0x7c] sm:$0xf]
    %v2279 = vld [vmem:[%s6] sm:$0x1]
    %v2281 = vlaneseq
    %v2282 = vshrl.u32 %v2281, 7
    %v2283 = vsub.s32 0, %v2282
    %v2284 = vrot.slane %v2279, %v2283
    %v2318 = vunpack.c.l.b16 %v2247
    %v2319 = vunpack.c.l.b16 %v2248
    %v2320 = vunpack.c.l.b16 %v2249
    %v2321 = vunpack.c.l.b16 %v2250
    %v2322 = vunpack.c.l.b16 %v2251
    %v2323 = vunpack.c.l.b16 %v2252
    %v2324 = vunpack.c.l.b16 %v2253
    %v2325 = vunpack.c.l.b16 %v2254
    %v2326 = vunpack.c.l.b16 %v2255
    %v2327 = vunpack.c.l.b16 %v2256
    %v2328 = vunpack.c.l.b16 %v2257
    %v2329 = vunpack.c.l.b16 %v2258
    %v2330 = vunpack.c.l.b16 %v2259
    %v2331 = vunpack.c.l.b16 %v2260
    %v2332 = vunpack.c.l.b16 %v2261
    %v2333 = vunpack.c.l.b16 %v2262
    %v2334 = vunpack.c.l.b16 %v2263
    %v2335 = vunpack.c.l.b16 %v2264
    %v2336 = vunpack.c.l.b16 %v2265
    %v2337 = vunpack.c.l.b16 %v2266
    %v2338 = vunpack.c.l.b16 %v2267
    %v2339 = vunpack.c.l.b16 %v2268
    %v2340 = vunpack.c.l.b16 %v2269
    %v2341 = vunpack.c.l.b16 %v2270
    %v2342 = vunpack.c.l.b16 %v2271
    %v2343 = vunpack.c.l.b16 %v2272
    %v2344 = vunpack.c.l.b16 %v2273
    %v2345 = vunpack.c.l.b16 %v2274
    %v2346 = vunpack.c.l.b16 %v2275
    %v2347 = vunpack.c.l.b16 %v2276
    %v2348 = vunpack.c.l.b16 %v2277
    %v2349 = vunpack.c.l.b16 %v2278
    %v2350 = vpack.c.b16 %v2319, %v2318
    %v2351 = vpack.c.b16 %v2321, %v2320
    %v2352 = vpack.c.b16 %v2323, %v2322
    %v2353 = vpack.c.b16 %v2325, %v2324
    %v2354 = vpack.c.b16 %v2327, %v2326
    %v2355 = vpack.c.b16 %v2329, %v2328
    %v2356 = vpack.c.b16 %v2331, %v2330
    %v2357 = vpack.c.b16 %v2333, %v2332
    %v2358 = vpack.c.b16 %v2335, %v2334
    %v2359 = vpack.c.b16 %v2337, %v2336
    %v2360 = vpack.c.b16 %v2339, %v2338
    %v2361 = vpack.c.b16 %v2341, %v2340
    %v2362 = vpack.c.b16 %v2343, %v2342
    %v2363 = vpack.c.b16 %v2345, %v2344
    %v2364 = vpack.c.b16 %v2347, %v2346
    %v2365 = vpack.c.b16 %v2349, %v2348
    %2382 = vmatprep.subr.bf16.mxu0 0
    %2383 = vmatpush1.bf16.msra.mxu0 %v2350
    %2384 = vmatprep.subr.bf16.mxu0 0
    %2385 = vmatpush1.bf16.msra.mxu0 %v2351
    %2386 = vmatprep.subr.bf16.mxu0 0
    %2387 = vmatpush1.bf16.msra.mxu0 %v2352
    %2388 = vmatprep.subr.bf16.mxu0 0
    %2389 = vmatpush1.bf16.msra.mxu0 %v2353
    %2390 = vmatprep.subr.bf16.mxu0 0
    %2391 = vmatpush1.bf16.msra.mxu0 %v2354
    %2392 = vmatprep.subr.bf16.mxu0 0
    %2393 = vmatpush1.bf16.msra.mxu0 %v2355
    %2394 = vmatprep.subr.bf16.mxu0 0
    %2395 = vmatpush1.bf16.msra.mxu0 %v2356
    %2396 = vmatprep.subr.bf16.mxu0 0
    %2397 = vmatpush1.bf16.msra.mxu0 %v2357
    %2398 = vmatprep.subr.bf16.mxu0 0
    %2399 = vmatpush1.bf16.msra.mxu0 %v2358
    %2400 = vmatprep.subr.bf16.mxu0 0
    %2401 = vmatpush1.bf16.msra.mxu0 %v2359
    %2402 = vmatprep.subr.bf16.mxu0 0
    %2403 = vmatpush1.bf16.msra.mxu0 %v2360
    %2404 = vmatprep.subr.bf16.mxu0 0
    %2405 = vmatpush1.bf16.msra.mxu0 %v2361
    %2406 = vmatprep.subr.bf16.mxu0 0
    %2407 = vmatpush1.bf16.msra.mxu0 %v2362
    %2408 = vmatprep.subr.bf16.mxu0 0
    %2409 = vmatpush1.bf16.msra.mxu0 %v2363
    %2410 = vmatprep.subr.bf16.mxu0 0
    %2411 = vmatpush1.bf16.msra.mxu0 %v2364
    %2412 = vmatprep.subr.bf16.mxu0 0
    %2413 = vmatpush1.bf16.msra.mxu0 %v2365
    %2414 = vmatprep.mubr.bf16.mxu0 %v2246
    %2415 = vmatmul.mubr.bf16.gmra.mrb[0].mxu0 %v2245
    %v2416 = vpop.f32.mrb[0].mxu0
    %v2417 = vadd.f32 %v2284, %v2416
    %v2418 = vpop.f32.mrb[0].mxu0
    %v2419 = vpop.f32.mrb[0].mxu0
    %v2420 = vpop.f32.mrb[0].mxu0
    %2421 = vdwg.mxu0
    %v2422 = vmax.f32 %v2417, 0.0
    %v2423 = vpack.c.bf16 %v2422, %v2422
    %v2424 = vld [vmem:[%s7] sm:$0xf]
    %v2425 = vld [vmem:[%s7 + $0x4] sm:$0xf]
    %v2426 = vld [vmem:[%s7 + $0x8] sm:$0xf]
    %v2427 = vld [vmem:[%s7 + $0xc] sm:$0xf]
    %v2428 = vld [vmem:[%s7 + $0x10] sm:$0xf]
    %v2429 = vld [vmem:[%s7 + $0x14] sm:$0xf]
    %v2430 = vld [vmem:[%s7 + $0x18] sm:$0xf]
    %v2431 = vld [vmem:[%s7 + $0x1c] sm:$0xf]
    %v2432 = vld [vmem:[%s7 + $0x20] sm:$0xf]
    %v2433 = vld [vmem:[%s7 + $0x24] sm:$0xf]
    %v2434 = vld [vmem:[%s7 + $0x28] sm:$0xf]
    %v2435 = vld [vmem:[%s7 + $0x2c] sm:$0xf]
    %v2436 = vld [vmem:[%s7 + $0x30] sm:$0xf]
    %v2437 = vld [vmem:[%s7 + $0x34] sm:$0xf]
    %v2438 = vld [vmem:[%s7 + $0x38] sm:$0xf]
    %v2439 = vld [vmem:[%s7 + $0x3c] sm:$0xf]
    %v2440 = vld [vmem:[%s8] sm:$0x1]
    %v2442 = vlaneseq
    %v2443 = vshrl.u32 %v2442, 7
    %v2444 = vsub.s32 0, %v2443
    %v2445 = vrot.slane %v2440, %v2444
    %v2463 = vunpack.c.l.b16 %v2424
    %v2464 = vunpack.c.l.b16 %v2425
    %v2465 = vunpack.c.l.b16 %v2426
    %v2466 = vunpack.c.l.b16 %v2427
    %v2467 = vunpack.c.l.b16 %v2428
    %v2468 = vunpack.c.l.b16 %v2429
    %v2469 = vunpack.c.l.b16 %v2430
    %v2470 = vunpack.c.l.b16 %v2431
    %v2471 = vunpack.c.l.b16 %v2432
    %v2472 = vunpack.c.l.b16 %v2433
    %v2473 = vunpack.c.l.b16 %v2434
    %v2474 = vunpack.c.l.b16 %v2435
    %v2475 = vunpack.c.l.b16 %v2436
    %v2476 = vunpack.c.l.b16 %v2437
    %v2477 = vunpack.c.l.b16 %v2438
    %v2478 = vunpack.c.l.b16 %v2439
    %v2479 = vpack.c.b16 %v2464, %v2463
    %v2480 = vpack.c.b16 %v2466, %v2465
    %v2481 = vpack.c.b16 %v2468, %v2467
    %v2482 = vpack.c.b16 %v2470, %v2469
    %v2483 = vpack.c.b16 %v2472, %v2471
    %v2484 = vpack.c.b16 %v2474, %v2473
    %v2485 = vpack.c.b16 %v2476, %v2475
    %v2486 = vpack.c.b16 %v2478, %v2477
    %2495 = vmatprep.subr.bf16.mxu0 0
    %2496 = vmatpush1.bf16.msra.mxu0 %v2479
    %2497 = vmatprep.subr.bf16.mxu0 0
    %2498 = vmatpush1.bf16.msra.mxu0 %v2480
    %2499 = vmatprep.subr.bf16.mxu0 0
    %2500 = vmatpush1.bf16.msra.mxu0 %v2481
    %2501 = vmatprep.subr.bf16.mxu0 0
    %2502 = vmatpush1.bf16.msra.mxu0 %v2482
    %2503 = vmatprep.subr.bf16.mxu0 0
    %2504 = vmatpush1.bf16.msra.mxu0 %v2483
    %2505 = vmatprep.subr.bf16.mxu0 0
    %2506 = vmatpush1.bf16.msra.mxu0 %v2484
    %2507 = vmatprep.subr.bf16.mxu0 0
    %2508 = vmatpush1.bf16.msra.mxu0 %v2485
    %2509 = vmatprep.subr.bf16.mxu0 0
    %2510 = vmatpush1.bf16.msra.mxu0 %v2486
    %2511 = vmatprep.subr.bf16.mxu0 0
    %2512 = vmatpush1.bf16.msra.mxu0 0
    %2513 = vmatprep.subr.bf16.mxu0 0
    %2514 = vmatpush1.bf16.msra.mxu0 0
    %2515 = vmatprep.subr.bf16.mxu0 0
    %2516 = vmatpush1.bf16.msra.mxu0 0
    %2517 = vmatprep.subr.bf16.mxu0 0
    %2518 = vmatpush1.bf16.msra.mxu0 0
    %2519 = vmatprep.subr.bf16.mxu0 0
    %2520 = vmatpush1.bf16.msra.mxu0 0
    %2521 = vmatprep.subr.bf16.mxu0 0
    %2522 = vmatpush1.bf16.msra.mxu0 0
    %2523 = vmatprep.subr.bf16.mxu0 0
    %2524 = vmatpush1.bf16.msra.mxu0 0
    %2525 = vmatprep.subr.bf16.mxu0 0
    %2526 = vmatpush1.bf16.msra.mxu0 0
    %2527 = vmatprep.mubr.bf16.mxu0 0
    %2528 = vmatmul.mubr.bf16.gmra.mrb[0].mxu0 %v2423
    %v2529 = vpop.f32.mrb[0].mxu0
    %v2530 = vadd.f32 %v2445, %v2529
    %v2531 = vpop.f32.mrb[0].mxu0
    %v2532 = vpop.f32.mrb[0].mxu0
    %v2533 = vpop.f32.mrb[0].mxu0
    %2534 = vdwg.mxu0
    %2535 = vmax.xlane.f32.xlu0 %v2530
    %v2536 = vpop.xlane.xlu0 %2535
    %v2537 = vsub.f32 %v2530, %v2536
    %v2538 = vmul.f32 %v2537, 1.442695
    %v2539 = vpow.pop %v2538
    %2540 = vadd.xlane.f32.xlu0 %v2539
    %v2541 = vpop.xlane.xlu0 %2540
    %v2542 = vlog2.pop %v2541
    %v2543 = vmul.f32 %v2542, 0.6931472
    %v2544 = vsub.f32 %v2537, %v2543
    %2545 = vst [vmem:[#allocation2] sm:$0xff] %v2544
    // Predicated region
    $region38: #{fc_model_forward.1} parent=1 // pred_check
      _
    $region39: #{fc_model_forward.1} parent=1 // pred_check_branch
      %2547 = sbr.rel (0) target = $region41
    $region40: #{fc_model_forward.1} parent=1 // pred_region
      %s2549 = ssub.s32 128, 128
      %2550 = vsyncadd [#allocation3], %s2549
      %s2552 = sshll.u32 [#allocation2], 4
      %s2553 = int_to_ptr.vmem [resolvable:$true] %s2552
      %2555 = dma.vmem_to_hbm [thread:$0]  %s2553, 128, %s9, [#allocation3]
    $region41: #{fc_model_forward.1} parent=1 // pred_fallthru
      _
    // Predicated region
    $region42: #{fc_model_forward.1} parent=1 // pred_check
      _
    $region43: #{fc_model_forward.1} parent=1 // pred_check_branch
      %2557 = sbr.rel (0) target = $region45
    $region44: #{fc_model_forward.1} parent=1 // pred_region
      %2558 = dma.done [#allocation3], 128
    $region45: #{fc_model_forward.1} parent=1 // pred_fallthru
      _
    %2559 = vsyncpa [#allocation3], 1

</llo_original>
